<compile_context>
chip_gen: v7x
topology: tpu7x:2x2x1
jax: 0.10.0
libtpu: 0.0.40
codegen_flags: <defaults>
</compile_context>

<pallas_src>
import math

import jax
import jax.numpy as jnp
from jax import lax
from jax.experimental import pallas as pl
from jax.experimental.pallas import tpu as pltpu

# ---- small, self-consistent toy hyperparameters (scaled down from d_model=512, h=6) ----
D_MODEL = 32
N_HEADS = 4
D_K = D_MODEL // N_HEADS          # per-head dim (d_k = d_model // h, as in the PyTorch code)
HD = N_HEADS * D_K                # concatenated head dim (== d_model here)
SEQ = 8
BATCH = 2


def mha_kernel(x_ref, wqkv_ref, wp_ref, bp_ref, o_ref, attn_ref):
    B, T, D = x_ref.shape

    # Fold batch into the row (sublane) axis for the projections: (B*T, D).
    x2 = x_ref[...].reshape(B * T, D)

    # ---- fused QKV projection (one matmul; Q columns are pre-scaled by 1/sqrt(d_model)) ----
    qkv = jnp.dot(x2, wqkv_ref[...], preferred_element_type=jnp.float32)   # (B*T, 3*HD)
    q = qkv[:, 0 * HD:1 * HD].reshape(B, T, HD)
    k = qkv[:, 1 * HD:2 * HD].reshape(B, T, HD)
    v = qkv[:, 2 * HD:3 * HD].reshape(B, T, HD)

    # ---- causal mask, built once and reused by every head ----
    rows = lax.broadcasted_iota(jnp.int32, (B, T, T), 1)
    cols = lax.broadcasted_iota(jnp.int32, (B, T, T), 2)
    causal = rows >= cols

    # ---- per-head attention: scores/PV are batched over B, no explicit transpose ----
    for h in range(N_HEADS):
        sl = slice(h * D_K, (h + 1) * D_K)
        qh = q[:, :, sl]                                    # (B, T, d_k)
        kh = k[:, :, sl]
        vh = v[:, :, sl]

        s = jnp.einsum('btd,bsd->bts', qh, kh,
                       preferred_element_type=jnp.float32)  # (B, T, T)
        s = jnp.where(causal, s, -jnp.inf)
        s = s - jnp.max(s, axis=-1, keepdims=True)
        p = jnp.exp(s)
        p = p * pl.reciprocal(jnp.sum(p, axis=-1, keepdims=True), approx=True)
        # attention-dropout is identity at inference

        attn_ref[:, :, sl] = jnp.einsum('bts,bsd->btd', p, vh,
                                        preferred_element_type=jnp.float32)

    # ---- single fused output projection over the packed heads ----
    out = jnp.dot(attn_ref[...].reshape(B * T, HD), wp_ref[...],
                  preferred_element_type=jnp.float32) + bp_ref[...]
    # projection-dropout is identity at inference
    o_ref[...] = out.reshape(B, T, D).astype(o_ref.dtype)


def multi_head_attention(x, kernel_params):
    """Pallas wrapper. kernel_params = (wqkv, wp, bp) from pack_kernel_params()."""
    wqkv, wp, bp = kernel_params
    B, T, D = x.shape

    grid_spec = pltpu.PrefetchScalarGridSpec(
        num_scalar_prefetch=0,
        grid=(1,),                                            # whole batch in one step
        in_specs=[
            pl.BlockSpec((B, T, D), lambda i: (0, 0, 0)),     # x
            pl.BlockSpec(wqkv.shape, lambda i: (0, 0)),       # fused Wqkv (D, 3*HD)
            pl.BlockSpec(wp.shape, lambda i: (0, 0)),         # projection W (HD, D)
            pl.BlockSpec(bp.shape, lambda i: (0, 0)),         # projection b (1, D)
        ],
        out_specs=pl.BlockSpec((B, T, D), lambda i: (0, 0, 0)),
        scratch_shapes=[pltpu.VMEM((B, T, HD), jnp.float32)],  # packed head outputs
    )

    return pl.pallas_call(
        mha_kernel,
        out_shape=jax.ShapeDtypeStruct((B, T, D), x.dtype),
        grid_spec=grid_spec,
        compiler_params=pltpu.CompilerParams(dimension_semantics=("arbitrary",)),
    )(x, wqkv, wp, bp)


# ----------------------------- parameters -----------------------------

def init_params(key):
    """Per-head weights in x @ W orientation (in, out), matching torch nn.Linear init."""
    ks = jax.random.split(key, 5)

    def linear_w(k, fan_in, fan_out):
        bound = 1.0 / math.sqrt(fan_in)
        return jax.random.uniform(k, (fan_in, fan_out), jnp.float32, -bound, bound)

    wq = jnp.stack([linear_w(k, D_MODEL, D_K) for k in jax.random.split(ks[0], N_HEADS)])
    wk = jnp.stack([linear_w(k, D_MODEL, D_K) for k in jax.random.split(ks[1], N_HEADS)])
    wv = jnp.stack([linear_w(k, D_MODEL, D_K) for k in jax.random.split(ks[2], N_HEADS)])
    wp = linear_w(ks[3], HD, D_MODEL)
    bound = 1.0 / math.sqrt(HD)
    bp = jax.random.uniform(ks[4], (1, D_MODEL), jnp.float32, -bound, bound)
    return wq, wk, wv, wp, bp


def pack_kernel_params(params):
    """One-time fusion: (H, D, d_k) Q/K/V -> single (D, 3*H*d_k) matrix, head-major columns.
    The 1/sqrt(d_model) score scale is folded into the Q columns here (not per call)."""
    wq, wk, wv, wp, bp = params
    scale = 1.0 / math.sqrt(D_MODEL)

    def fuse(w):                       # (H, D, d_k) -> (D, H*d_k)
        return jnp.transpose(w, (1, 0, 2)).reshape(D_MODEL, HD)

    wqkv = jnp.concatenate([fuse(wq) * scale, fuse(wk), fuse(wv)], axis=-1)  # (D, 3*HD)
    return wqkv, wp, bp


# ----------------------------- reference -----------------------------

def mha_reference(x, params):
    """Faithful JAX translation of the PyTorch MultiHeadAttention forward (eval mode)."""
    wq, wk, wv, wp, bp = params
    T = x.shape[1]
    mask = jnp.tril(jnp.ones((T, T), bool))
    heads = []
    for i in range(N_HEADS):
        q = x @ wq[i]
        k = x @ wk[i]
        v = x @ wv[i]
        s = (q @ jnp.swapaxes(k, -1, -2)) / math.sqrt(D_MODEL)   # 1/sqrt(C), C = d_model
        s = jnp.where(mask, s, -jnp.inf)
        heads.append(jax.nn.softmax(s, axis=-1) @ v)
    return jnp.concatenate(heads, axis=-1) @ wp + bp


if __name__ == "__main__":
    key = jax.random.PRNGKey(0)
    kx, kp = jax.random.split(key)
    x = jax.random.normal(kx, (BATCH, SEQ, D_MODEL), jnp.float32)

    params = init_params(kp)
    kparams = pack_kernel_params(params)

    out = multi_head_attention(x, kparams)
    out = jax.block_until_ready(out)

    ref = mha_reference(x, params)
    assert out.shape == (BATCH, SEQ, D_MODEL)
    # approx reciprocal in the kernel softmax loosens the match vs the exact-divide reference
    assert jnp.allclose(out, ref, atol=5e-3, rtol=5e-3), "mismatch vs reference"
    print("KERNEL_OK")
</pallas_src>

<mosaic_0001>
module attributes {stable_mosaic.version = 11 : i64} {
  func.func @mha_kernel(%arg0: i32, %arg1: memref<2x8x32xf32, #tpu.memory_space<vmem>>, %arg2: memref<32x96xf32, #tpu.memory_space<vmem>>, %arg3: memref<32x32xf32, #tpu.memory_space<vmem>>, %arg4: memref<1x32xf32, #tpu.memory_space<vmem>>, %arg5: memref<2x8x32xf32, #tpu.memory_space<vmem>>, %arg6: memref<2x8x32xf32, #tpu.memory_space<vmem>>) attributes {dimension_semantics = [#tpu.dimension_semantics<arbitrary>], iteration_bounds = array<i64: 1>, scalar_prefetch = 0 : i64, scratch_operands = 1 : i64, tpu.core_type = #tpu.core_type<tc>, window_params = [{pipeline_mode = #tpu.pipeline_mode<synchronous>, transform_indices = @transform_0, window_bounds = array<i64: 2, 8, 32>}, {pipeline_mode = #tpu.pipeline_mode<synchronous>, transform_indices = @transform_1, window_bounds = array<i64: 32, 96>}, {pipeline_mode = #tpu.pipeline_mode<synchronous>, transform_indices = @transform_2, window_bounds = array<i64: 32, 32>}, {pipeline_mode = #tpu.pipeline_mode<synchronous>, transform_indices = @transform_3, window_bounds = array<i64: 1, 32>}, {pipeline_mode = #tpu.pipeline_mode<synchronous>, transform_indices = @transform_4, window_bounds = array<i64: 2, 8, 32>}]} {
    %c0 = arith.constant 0 : index
    %c0_0 = arith.constant 0 : index
    %c0_1 = arith.constant 0 : index
    %0 = vector.load %arg1[%c0, %c0_0, %c0_1] : memref<2x8x32xf32, #tpu.memory_space<vmem>>, vector<2x8x32xf32>
    %1 = vector.shape_cast %0 : vector<2x8x32xf32> to vector<16x32xf32>
    %c0_2 = arith.constant 0 : index
    %c0_3 = arith.constant 0 : index
    %2 = vector.load %arg2[%c0_2, %c0_3] : memref<32x96xf32, #tpu.memory_space<vmem>>, vector<32x96xf32>
    %cst = arith.constant dense<0.000000e+00> : vector<16x96xf32>
    %3 = tpu.matmul %1, %2, %cst {dimension_numbers = #tpu.dot_dimension_numbers<[1], [0], [0], [1], [0, 0, 1, 1], [], []>} : vector<16x32xf32>, vector<32x96xf32>, vector<16x96xf32> -> vector<16x96xf32>
    %4 = vector.extract_strided_slice %3 {offsets = [0, 0], sizes = [16, 32], strides = [1, 1]} : vector<16x96xf32> to vector<16x32xf32>
    %5 = vector.shape_cast %4 : vector<16x32xf32> to vector<2x8x32xf32>
    %6 = vector.extract_strided_slice %3 {offsets = [0, 32], sizes = [16, 32], strides = [1, 1]} : vector<16x96xf32> to vector<16x32xf32>
    %7 = vector.shape_cast %6 : vector<16x32xf32> to vector<2x8x32xf32>
    %8 = vector.extract_strided_slice %3 {offsets = [0, 64], sizes = [16, 32], strides = [1, 1]} : vector<16x96xf32> to vector<16x32xf32>
    %9 = vector.shape_cast %8 : vector<16x32xf32> to vector<2x8x32xf32>
    %10 = tpu.iota {dimensions = array<i32: 1>} : vector<2x8x8xi32>
    %11 = tpu.iota {dimensions = array<i32: 2>} : vector<2x8x8xi32>
    %12 = arith.cmpi sge, %10, %11 : vector<2x8x8xi32>
    %13 = vector.extract_strided_slice %5 {offsets = [0, 0, 0], sizes = [2, 8, 8], strides = [1, 1, 1]} : vector<2x8x32xf32> to vector<2x8x8xf32>
    %14 = vector.extract_strided_slice %7 {offsets = [0, 0, 0], sizes = [2, 8, 8], strides = [1, 1, 1]} : vector<2x8x32xf32> to vector<2x8x8xf32>
    %15 = vector.extract_strided_slice %9 {offsets = [0, 0, 0], sizes = [2, 8, 8], strides = [1, 1, 1]} : vector<2x8x32xf32> to vector<2x8x8xf32>
    "tpu.trace_start"() <{level = 10 : i32, message = "btd,bsd->bts"}> : () -> ()
    %cst_4 = arith.constant dense<0.000000e+00> : vector<2x8x8xf32>
    %16 = tpu.matmul %13, %14, %cst_4 {dimension_numbers = #tpu.dot_dimension_numbers<[2], [2], [1], [1], [0, 0, 0, 1, 1, 1], [0], [0]>} : vector<2x8x8xf32>, vector<2x8x8xf32>, vector<2x8x8xf32> -> vector<2x8x8xf32>
    %cst_5 = arith.constant 0xFF800000 : f32
    "tpu.trace_stop"() : () -> ()
    %17 = vector.broadcast %cst_5 : f32 to vector<2x8x8xf32>
    %18 = arith.select %12, %16, %17 : vector<2x8x8xi1>, vector<2x8x8xf32>
    %cst_6 = arith.constant dense<0xFF800000> : vector<2x8xf32>
    %19 = vector.multi_reduction <maximumf>, %18, %cst_6 [2] : vector<2x8x8xf32> to vector<2x8xf32>
    %20 = vector.shape_cast %19 : vector<2x8xf32> to vector<2x8x1xf32>
    %21 = vector.broadcast %20 : vector<2x8x1xf32> to vector<2x8x8xf32>
    %22 = arith.subf %18, %21 : vector<2x8x8xf32>
    %23 = math.exp %22 : vector<2x8x8xf32>
    %cst_7 = arith.constant dense<0.000000e+00> : vector<2x8xf32>
    %24 = vector.multi_reduction <add>, %23, %cst_7 [2] : vector<2x8x8xf32> to vector<2x8xf32>
    %25 = vector.shape_cast %24 : vector<2x8xf32> to vector<2x8x1xf32>
    %26 = tpu.reciprocal %25 {approx = true} : vector<2x8x1xf32> -> vector<2x8x1xf32>
    %27 = vector.broadcast %26 : vector<2x8x1xf32> to vector<2x8x8xf32>
    %28 = arith.mulf %23, %27 : vector<2x8x8xf32>
    "tpu.trace_start"() <{level = 10 : i32, message = "bts,bsd->btd"}> : () -> ()
    %cst_8 = arith.constant dense<0.000000e+00> : vector<2x8x8xf32>
    %29 = tpu.matmul %28, %15, %cst_8 {dimension_numbers = #tpu.dot_dimension_numbers<[2], [1], [1], [2], [0, 0, 0, 1, 1, 2], [0], [0]>} : vector<2x8x8xf32>, vector<2x8x8xf32>, vector<2x8x8xf32> -> vector<2x8x8xf32>
    "tpu.trace_stop"() : () -> ()
    %c0_9 = arith.constant 0 : index
    %c0_10 = arith.constant 0 : index
    %c0_11 = arith.constant 0 : index
    %30 = vector.load %arg6[%c0_9, %c0_10, %c0_11] : memref<2x8x32xf32, #tpu.memory_space<vmem>>, vector<2x8x8xf32>
    tpu.vector_store %arg6[%c0_9, %c0_10, %c0_11], %29 {strides = array<i32>} : memref<2x8x32xf32, #tpu.memory_space<vmem>>, vector<2x8x8xf32>,
    %31 = vector.extract_strided_slice %5 {offsets = [0, 0, 8], sizes = [2, 8, 8], strides = [1, 1, 1]} : vector<2x8x32xf32> to vector<2x8x8xf32>
    %32 = vector.extract_strided_slice %7 {offsets = [0, 0, 8], sizes = [2, 8, 8], strides = [1, 1, 1]} : vector<2x8x32xf32> to vector<2x8x8xf32>
    %33 = vector.extract_strided_slice %9 {offsets = [0, 0, 8], sizes = [2, 8, 8], strides = [1, 1, 1]} : vector<2x8x32xf32> to vector<2x8x8xf32>
    "tpu.trace_start"() <{level = 10 : i32, message = "btd,bsd->bts"}> : () -> ()
    %cst_12 = arith.constant dense<0.000000e+00> : vector<2x8x8xf32>
    %34 = tpu.matmul %31, %32, %cst_12 {dimension_numbers = #tpu.dot_dimension_numbers<[2], [2], [1], [1], [0, 0, 0, 1, 1, 1], [0], [0]>} : vector<2x8x8xf32>, vector<2x8x8xf32>, vector<2x8x8xf32> -> vector<2x8x8xf32>
    %cst_13 = arith.constant 0xFF800000 : f32
    "tpu.trace_stop"() : () -> ()
    %35 = vector.broadcast %cst_13 : f32 to vector<2x8x8xf32>
    %36 = arith.select %12, %34, %35 : vector<2x8x8xi1>, vector<2x8x8xf32>
    %cst_14 = arith.constant dense<0xFF800000> : vector<2x8xf32>
    %37 = vector.multi_reduction <maximumf>, %36, %cst_14 [2] : vector<2x8x8xf32> to vector<2x8xf32>
    %38 = vector.shape_cast %37 : vector<2x8xf32> to vector<2x8x1xf32>
    %39 = vector.broadcast %38 : vector<2x8x1xf32> to vector<2x8x8xf32>
    %40 = arith.subf %36, %39 : vector<2x8x8xf32>
    %41 = math.exp %40 : vector<2x8x8xf32>
    %cst_15 = arith.constant dense<0.000000e+00> : vector<2x8xf32>
    %42 = vector.multi_reduction <add>, %41, %cst_15 [2] : vector<2x8x8xf32> to vector<2x8xf32>
    %43 = vector.shape_cast %42 : vector<2x8xf32> to vector<2x8x1xf32>
    %44 = tpu.reciprocal %43 {approx = true} : vector<2x8x1xf32> -> vector<2x8x1xf32>
    %45 = vector.broadcast %44 : vector<2x8x1xf32> to vector<2x8x8xf32>
    %46 = arith.mulf %41, %45 : vector<2x8x8xf32>
    "tpu.trace_start"() <{level = 10 : i32, message = "bts,bsd->btd"}> : () -> ()
    %cst_16 = arith.constant dense<0.000000e+00> : vector<2x8x8xf32>
    %47 = tpu.matmul %46, %33, %cst_16 {dimension_numbers = #tpu.dot_dimension_numbers<[2], [1], [1], [2], [0, 0, 0, 1, 1, 2], [0], [0]>} : vector<2x8x8xf32>, vector<2x8x8xf32>, vector<2x8x8xf32> -> vector<2x8x8xf32>
    "tpu.trace_stop"() : () -> ()
    %c0_17 = arith.constant 0 : index
    %c0_18 = arith.constant 0 : index
    %c8 = arith.constant 8 : index
    %48 = vector.load %arg6[%c0_17, %c0_18, %c8] : memref<2x8x32xf32, #tpu.memory_space<vmem>>, vector<2x8x8xf32>
    tpu.vector_store %arg6[%c0_17, %c0_18, %c8], %47 {strides = array<i32>} : memref<2x8x32xf32, #tpu.memory_space<vmem>>, vector<2x8x8xf32>,
    %49 = vector.extract_strided_slice %5 {offsets = [0, 0, 16], sizes = [2, 8, 8], strides = [1, 1, 1]} : vector<2x8x32xf32> to vector<2x8x8xf32>
    %50 = vector.extract_strided_slice %7 {offsets = [0, 0, 16], sizes = [2, 8, 8], strides = [1, 1, 1]} : vector<2x8x32xf32> to vector<2x8x8xf32>
    %51 = vector.extract_strided_slice %9 {offsets = [0, 0, 16], sizes = [2, 8, 8], strides = [1, 1, 1]} : vector<2x8x32xf32> to vector<2x8x8xf32>
    "tpu.trace_start"() <{level = 10 : i32, message = "btd,bsd->bts"}> : () -> ()
    %cst_19 = arith.constant dense<0.000000e+00> : vector<2x8x8xf32>
    %52 = tpu.matmul %49, %50, %cst_19 {dimension_numbers = #tpu.dot_dimension_numbers<[2], [2], [1], [1], [0, 0, 0, 1, 1, 1], [0], [0]>} : vector<2x8x8xf32>, vector<2x8x8xf32>, vector<2x8x8xf32> -> vector<2x8x8xf32>
    %cst_20 = arith.constant 0xFF800000 : f32
    "tpu.trace_stop"() : () -> ()
    %53 = vector.broadcast %cst_20 : f32 to vector<2x8x8xf32>
    %54 = arith.select %12, %52, %53 : vector<2x8x8xi1>, vector<2x8x8xf32>
    %cst_21 = arith.constant dense<0xFF800000> : vector<2x8xf32>
    %55 = vector.multi_reduction <maximumf>, %54, %cst_21 [2] : vector<2x8x8xf32> to vector<2x8xf32>
    %56 = vector.shape_cast %55 : vector<2x8xf32> to vector<2x8x1xf32>
    %57 = vector.broadcast %56 : vector<2x8x1xf32> to vector<2x8x8xf32>
    %58 = arith.subf %54, %57 : vector<2x8x8xf32>
    %59 = math.exp %58 : vector<2x8x8xf32>
    %cst_22 = arith.constant dense<0.000000e+00> : vector<2x8xf32>
    %60 = vector.multi_reduction <add>, %59, %cst_22 [2] : vector<2x8x8xf32> to vector<2x8xf32>
    %61 = vector.shape_cast %60 : vector<2x8xf32> to vector<2x8x1xf32>
    %62 = tpu.reciprocal %61 {approx = true} : vector<2x8x1xf32> -> vector<2x8x1xf32>
    %63 = vector.broadcast %62 : vector<2x8x1xf32> to vector<2x8x8xf32>
    %64 = arith.mulf %59, %63 : vector<2x8x8xf32>
    "tpu.trace_start"() <{level = 10 : i32, message = "bts,bsd->btd"}> : () -> ()
    %cst_23 = arith.constant dense<0.000000e+00> : vector<2x8x8xf32>
    %65 = tpu.matmul %64, %51, %cst_23 {dimension_numbers = #tpu.dot_dimension_numbers<[2], [1], [1], [2], [0, 0, 0, 1, 1, 2], [0], [0]>} : vector<2x8x8xf32>, vector<2x8x8xf32>, vector<2x8x8xf32> -> vector<2x8x8xf32>
    "tpu.trace_stop"() : () -> ()
    %c0_24 = arith.constant 0 : index
    %c0_25 = arith.constant 0 : index
    %c16 = arith.constant 16 : index
    %66 = vector.load %arg6[%c0_24, %c0_25, %c16] : memref<2x8x32xf32, #tpu.memory_space<vmem>>, vector<2x8x8xf32>
    tpu.vector_store %arg6[%c0_24, %c0_25, %c16], %65 {strides = array<i32>} : memref<2x8x32xf32, #tpu.memory_space<vmem>>, vector<2x8x8xf32>,
    %67 = vector.extract_strided_slice %5 {offsets = [0, 0, 24], sizes = [2, 8, 8], strides = [1, 1, 1]} : vector<2x8x32xf32> to vector<2x8x8xf32>
    %68 = vector.extract_strided_slice %7 {offsets = [0, 0, 24], sizes = [2, 8, 8], strides = [1, 1, 1]} : vector<2x8x32xf32> to vector<2x8x8xf32>
    %69 = vector.extract_strided_slice %9 {offsets = [0, 0, 24], sizes = [2, 8, 8], strides = [1, 1, 1]} : vector<2x8x32xf32> to vector<2x8x8xf32>
    "tpu.trace_start"() <{level = 10 : i32, message = "btd,bsd->bts"}> : () -> ()
    %cst_26 = arith.constant dense<0.000000e+00> : vector<2x8x8xf32>
    %70 = tpu.matmul %67, %68, %cst_26 {dimension_numbers = #tpu.dot_dimension_numbers<[2], [2], [1], [1], [0, 0, 0, 1, 1, 1], [0], [0]>} : vector<2x8x8xf32>, vector<2x8x8xf32>, vector<2x8x8xf32> -> vector<2x8x8xf32>
    %cst_27 = arith.constant 0xFF800000 : f32
    "tpu.trace_stop"() : () -> ()
    %71 = vector.broadcast %cst_27 : f32 to vector<2x8x8xf32>
    %72 = arith.select %12, %70, %71 : vector<2x8x8xi1>, vector<2x8x8xf32>
    %cst_28 = arith.constant dense<0xFF800000> : vector<2x8xf32>
    %73 = vector.multi_reduction <maximumf>, %72, %cst_28 [2] : vector<2x8x8xf32> to vector<2x8xf32>
    %74 = vector.shape_cast %73 : vector<2x8xf32> to vector<2x8x1xf32>
    %75 = vector.broadcast %74 : vector<2x8x1xf32> to vector<2x8x8xf32>
    %76 = arith.subf %72, %75 : vector<2x8x8xf32>
    %77 = math.exp %76 : vector<2x8x8xf32>
    %cst_29 = arith.constant dense<0.000000e+00> : vector<2x8xf32>
    %78 = vector.multi_reduction <add>, %77, %cst_29 [2] : vector<2x8x8xf32> to vector<2x8xf32>
    %79 = vector.shape_cast %78 : vector<2x8xf32> to vector<2x8x1xf32>
    %80 = tpu.reciprocal %79 {approx = true} : vector<2x8x1xf32> -> vector<2x8x1xf32>
    %81 = vector.broadcast %80 : vector<2x8x1xf32> to vector<2x8x8xf32>
    %82 = arith.mulf %77, %81 : vector<2x8x8xf32>
    "tpu.trace_start"() <{level = 10 : i32, message = "bts,bsd->btd"}> : () -> ()
    %cst_30 = arith.constant dense<0.000000e+00> : vector<2x8x8xf32>
    %83 = tpu.matmul %82, %69, %cst_30 {dimension_numbers = #tpu.dot_dimension_numbers<[2], [1], [1], [2], [0, 0, 0, 1, 1, 2], [0], [0]>} : vector<2x8x8xf32>, vector<2x8x8xf32>, vector<2x8x8xf32> -> vector<2x8x8xf32>
    "tpu.trace_stop"() : () -> ()
    %c0_31 = arith.constant 0 : index
    %c0_32 = arith.constant 0 : index
    %c24 = arith.constant 24 : index
    %84 = vector.load %arg6[%c0_31, %c0_32, %c24] : memref<2x8x32xf32, #tpu.memory_space<vmem>>, vector<2x8x8xf32>
    tpu.vector_store %arg6[%c0_31, %c0_32, %c24], %83 {strides = array<i32>} : memref<2x8x32xf32, #tpu.memory_space<vmem>>, vector<2x8x8xf32>,
    %c0_33 = arith.constant 0 : index
    %c0_34 = arith.constant 0 : index
    %c0_35 = arith.constant 0 : index
    %85 = vector.load %arg6[%c0_33, %c0_34, %c0_35] : memref<2x8x32xf32, #tpu.memory_space<vmem>>, vector<2x8x32xf32>
    %86 = vector.shape_cast %85 : vector<2x8x32xf32> to vector<16x32xf32>
    %c0_36 = arith.constant 0 : index
    %c0_37 = arith.constant 0 : index
    %87 = vector.load %arg3[%c0_36, %c0_37] : memref<32x32xf32, #tpu.memory_space<vmem>>, vector<32x32xf32>
    %cst_38 = arith.constant dense<0.000000e+00> : vector<16x32xf32>
    %88 = tpu.matmul %86, %87, %cst_38 {dimension_numbers = #tpu.dot_dimension_numbers<[1], [0], [0], [1], [0, 0, 1, 1], [], []>} : vector<16x32xf32>, vector<32x32xf32>, vector<16x32xf32> -> vector<16x32xf32>
    %c0_39 = arith.constant 0 : index
    %c0_40 = arith.constant 0 : index
    %89 = vector.load %arg4[%c0_39, %c0_40] : memref<1x32xf32, #tpu.memory_space<vmem>>, vector<1x32xf32>
    %90 = vector.broadcast %89 : vector<1x32xf32> to vector<16x32xf32>
    %91 = arith.addf %88, %90 : vector<16x32xf32>
    %92 = vector.shape_cast %91 : vector<16x32xf32> to vector<2x8x32xf32>
    %c0_41 = arith.constant 0 : index
    %c0_42 = arith.constant 0 : index
    %c0_43 = arith.constant 0 : index
    %93 = vector.load %arg5[%c0_41, %c0_42, %c0_43] : memref<2x8x32xf32, #tpu.memory_space<vmem>>, vector<2x8x32xf32>
    tpu.vector_store %arg5[%c0_41, %c0_42, %c0_43], %92 {strides = array<i32>} : memref<2x8x32xf32, #tpu.memory_space<vmem>>, vector<2x8x32xf32>,
    return
  }
  func.func @transform_0(%arg0: i32) -> (i32, i32, i32) {
    %c0_i32 = arith.constant 0 : i32
    %c0_i32_0 = arith.constant 0 : i32
    %c0_i32_1 = arith.constant 0 : i32
    %c0_i32_2 = arith.constant 0 : i32
    return %c0_i32, %c0_i32_0, %c0_i32_1 : i32, i32, i32
  }
  func.func @transform_1(%arg0: i32) -> (i32, i32) {
    %c0_i32 = arith.constant 0 : i32
    %c0_i32_0 = arith.constant 0 : i32
    %c0_i32_1 = arith.constant 0 : i32
    return %c0_i32, %c0_i32_0 : i32, i32
  }
  func.func @transform_2(%arg0: i32) -> (i32, i32) {
    %c0_i32 = arith.constant 0 : i32
    %c0_i32_0 = arith.constant 0 : i32
    %c0_i32_1 = arith.constant 0 : i32
    return %c0_i32, %c0_i32_0 : i32, i32
  }
  func.func @transform_3(%arg0: i32) -> (i32, i32) {
    %c0_i32 = arith.constant 0 : i32
    %c0_i32_0 = arith.constant 0 : i32
    %c0_i32_1 = arith.constant 0 : i32
    return %c0_i32, %c0_i32_0 : i32, i32
  }
  func.func @transform_4(%arg0: i32) -> (i32, i32, i32) {
    %c0_i32 = arith.constant 0 : i32
    %c0_i32_0 = arith.constant 0 : i32
    %c0_i32_1 = arith.constant 0 : i32
    %c0_i32_2 = arith.constant 0 : i32
    return %c0_i32, %c0_i32_0, %c0_i32_1 : i32, i32, i32
  }
}

</mosaic_0001>

<llo_original>
// kernel: tpu_custom_call.1
$region0: #{tpu_custom_call.1}
  #allocation0 [shape = 'u32[]', space=smem, size = 0x4, offset = 0x4, fixed_abs, tag = 'smem constant byte address 0x4 - core index']
  #allocation1 [shape = 'u32[144,128]{1,0:T(1,128)}', space=vmem, size = 0x12000, scoped, tag = 'internal scratch']
  #allocation2 [shape = 'f32[2,8,32]{2,1,0:T(8,128)}', space=vmem, size = 0x2000, scoped, tag = 'scratch operand']
  %s0 = inlined_call_operand.hbm [shape: f32[2,8,32], index: 0, kind: input, shape index: {}]
  %s1 = inlined_call_operand.hbm [shape: f32[32,96], index: 1, kind: input, shape index: {}]
  %s2 = inlined_call_operand.hbm [shape: f32[32,32], index: 2, kind: input, shape index: {}]
  %s3 = inlined_call_operand.vmem [shape: f32[1,32], index: 3, kind: input, shape index: {}]
  %s4 = inlined_call_operand.hbm [shape: f32[2,8,32], index: 4, kind: output, shape index: {}]
  %s5 = sld [smem:[#allocation0]]
  $region38: #{tpu_custom_call.1} parent=0
    _
  %s7 = ssub.s32 1, %s5
  %s8 = scalar_select 0, %s7, %s5
  $region1: #{tpu_custom_call.1} parent=0
    #allocation3 [shape = 'u8[8192]{0}', space=vmem, size = 0x2000, scoped, tag = 'input window, operand 0, single buffered']
    #allocation4 [shape = 's32[1]{0}', space=sflag, size = 0x4, scoped, tag = 'scoped memory for tpu_custom_call.1']
    #allocation5 [shape = 's32[1]{0}', space=sflag, size = 0x4, scoped, tag = 'scoped memory for tpu_custom_call.1']
    #allocation6 [shape = 'u8[16384]{0}', space=vmem, size = 0x4000, scoped, tag = 'input window, operand 1, single buffered']
    #allocation7 [shape = 's32[1]{0}', space=sflag, size = 0x4, scoped, tag = 'scoped memory for tpu_custom_call.1']
    #allocation8 [shape = 'u8[16384]{0}', space=vmem, size = 0x4000, scoped, tag = 'input window, operand 2, single buffered']
    #allocation9 [shape = 'u8[8192]{0}', space=vmem, size = 0x2000, scoped, tag = 'output window, operand 0, single buffered']
    %9 = vsyncpa [#allocation4], 0
    %10 = vsyncpa [#allocation7], 0
    %11 = vsyncpa [#allocation5], 0
    // Predicated region
    $region2: #{tpu_custom_call.1} parent=1 // pred_check
      _
    $region3: #{tpu_custom_call.1} parent=1 // pred_check_branch
      %13 = sbr.rel (0) target = $region5
    $region4: #{tpu_custom_call.1} parent=1 // pred_region
      %s15 = ssub.s32 256, 256
      %16 = vsyncadd [#allocation4], %s15
      %s17 = sshll.u32 [#allocation3], 4
      %s18 = int_to_ptr.vmem [resolvable:$true] %s17
      %23 = dma.hbm_to_vmem [thread:$0]  %s0, 256, %s18, [#allocation4], 128, 128, 8
    $region5: #{tpu_custom_call.1} parent=1 // pred_fallthru
      _
    // Predicated region
    $region6: #{tpu_custom_call.1} parent=1 // pred_check
      _
    $region7: #{tpu_custom_call.1} parent=1 // pred_check_branch
      %25 = sbr.rel (0) target = $region9
    $region8: #{tpu_custom_call.1} parent=1 // pred_region
      %s27 = ssub.s32 512, 512
      %28 = vsyncadd [#allocation7], %s27
      %s29 = sshll.u32 [#allocation6], 4
      %s30 = int_to_ptr.vmem [resolvable:$true] %s29
      %35 = dma.hbm_to_vmem [thread:$0]  %s1, 512, %s30, [#allocation7], 128, 128, 8
    $region9: #{tpu_custom_call.1} parent=1 // pred_fallthru
      _
    // Predicated region
    $region10: #{tpu_custom_call.1} parent=1 // pred_check
      _
    $region11: #{tpu_custom_call.1} parent=1 // pred_check_branch
      %37 = sbr.rel (0) target = $region13
    $region12: #{tpu_custom_call.1} parent=1 // pred_region
      %s39 = ssub.s32 512, 512
      %40 = vsyncadd [#allocation7], %s39
      %s41 = sshll.u32 [#allocation8], 4
      %s42 = int_to_ptr.vmem [resolvable:$true] %s41
      %47 = dma.hbm_to_vmem [thread:$0]  %s2, 512, %s42, [#allocation7], 128, 128, 8
    $region13: #{tpu_custom_call.1} parent=1 // pred_fallthru
      _
    // Predicated region
    $region14: #{tpu_custom_call.1} parent=1 // pred_check
      _
    $region15: #{tpu_custom_call.1} parent=1 // pred_check_branch
      %49 = sbr.rel (0) target = $region17
    $region16: #{tpu_custom_call.1} parent=1 // pred_region
      _
    $region17: #{tpu_custom_call.1} parent=1 // pred_fallthru
      _
    // Predicated region
    $region18: #{tpu_custom_call.1} parent=1 // pred_check
      _
    $region19: #{tpu_custom_call.1} parent=1 // pred_check_branch
      %51 = sbr.rel (0) target = $region21
    $region20: #{tpu_custom_call.1} parent=1 // pred_region
      %52 = dma.done [#allocation4], 256
    $region21: #{tpu_custom_call.1} parent=1 // pred_fallthru
      _
    // Predicated region
    $region22: #{tpu_custom_call.1} parent=1 // pred_check
      _
    $region23: #{tpu_custom_call.1} parent=1 // pred_check_branch
      %54 = sbr.rel (0) target = $region25
    $region24: #{tpu_custom_call.1} parent=1 // pred_region
      %55 = dma.done [#allocation7], 512
    $region25: #{tpu_custom_call.1} parent=1 // pred_fallthru
      _
    // Predicated region
    $region26: #{tpu_custom_call.1} parent=1 // pred_check
      _
    $region27: #{tpu_custom_call.1} parent=1 // pred_check_branch
      %57 = sbr.rel (0) target = $region29
    $region28: #{tpu_custom_call.1} parent=1 // pred_region
      %58 = dma.done [#allocation7], 512
    $region29: #{tpu_custom_call.1} parent=1 // pred_fallthru
      _
    %v59 = vld [vmem:[#allocation3] sm:$0xff]
    %v60 = vld [vmem:[#allocation3 + $0x8] sm:$0xff]
    %v61 = vld [vmem:[#allocation6] sm:$0xff]
    %v62 = vld [vmem:[#allocation6 + $0x8] sm:$0xff]
    %v63 = vld [vmem:[#allocation6 + $0x10] sm:$0xff]
    %v64 = vld [vmem:[#allocation6 + $0x18] sm:$0xff]
    %vm65 = vcmask 261120
    %v67 = vsel %vm65, %v59, 0
    %v70 = vsel %vm65, %v60, 0
    %72 = vmatprep.subr.mxu0 0.0
    %73 = vmatpush1.msra.mxu0 %v61
    %74 = vmatprep.subr.mxu0 0.0
    %75 = vmatpush1.msra.mxu0 %v62
    %76 = vmatprep.subr.mxu0 0.0
    %77 = vmatpush1.msra.mxu0 %v63
    %78 = vmatprep.subr.mxu0 0.0
    %79 = vmatpush1.msra.mxu0 %v64
    %80 = vmatprep.subr.mxu0 0.0
    %81 = vmatpush1.msra.mxu0 0.0
    %82 = vmatprep.subr.mxu0 0.0
    %83 = vmatpush1.msra.mxu0 0.0
    %84 = vmatprep.subr.mxu0 0.0
    %85 = vmatpush1.msra.mxu0 0.0
    %86 = vmatprep.subr.mxu0 0.0
    %87 = vmatpush1.msra.mxu0 0.0
    %88 = vmatprep.subr.mxu0 0.0
    %89 = vmatpush1.msra.mxu0 0.0
    %90 = vmatprep.subr.mxu0 0.0
    %91 = vmatpush1.msra.mxu0 0.0
    %92 = vmatprep.subr.mxu0 0.0
    %93 = vmatpush1.msra.mxu0 0.0
    %94 = vmatprep.subr.mxu0 0.0
    %95 = vmatpush1.msra.mxu0 0.0
    %96 = vmatprep.subr.mxu0 0.0
    %97 = vmatpush1.msra.mxu0 0.0
    %98 = vmatprep.subr.mxu0 0.0
    %99 = vmatpush1.msra.mxu0 0.0
    %100 = vmatprep.subr.mxu0 0.0
    %101 = vmatpush1.msra.mxu0 0.0
    %102 = vmatprep.subr.mxu0 0.0
    %103 = vmatpush1.msra.mxu0 0.0
    %104 = vmatprep.subr.mxu0 0.0
    %105 = vmatpush1.msra.mxu0 0.0
    %106 = vmatprep.subr.mxu0 0.0
    %107 = vmatpush1.msra.mxu0 0.0
    %108 = vmatprep.subr.mxu0 0.0
    %109 = vmatpush1.msra.mxu0 0.0
    %110 = vmatprep.subr.mxu0 0.0
    %111 = vmatpush1.msra.mxu0 0.0
    %112 = vmatprep.subr.mxu0 0.0
    %113 = vmatpush1.msra.mxu0 0.0
    %114 = vmatprep.subr.mxu0 0.0
    %115 = vmatpush1.msra.mxu0 0.0
    %116 = vmatprep.subr.mxu0 0.0
    %117 = vmatpush1.msra.mxu0 0.0
    %118 = vmatprep.subr.mxu0 0.0
    %119 = vmatpush1.msra.mxu0 0.0
    %120 = vmatprep.subr.mxu0 0.0
    %121 = vmatpush1.msra.mxu0 0.0
    %122 = vmatprep.subr.mxu0 0.0
    %123 = vmatpush1.msra.mxu0 0.0
    %124 = vmatprep.subr.mxu0 0.0
    %125 = vmatpush1.msra.mxu0 0.0
    %126 = vmatprep.subr.mxu0 0.0
    %127 = vmatpush1.msra.mxu0 0.0
    %128 = vmatprep.subr.mxu0 0.0
    %129 = vmatpush1.msra.mxu0 0.0
    %130 = vmatprep.subr.mxu0 0.0
    %131 = vmatpush1.msra.mxu0 0.0
    %132 = vmatprep.subr.mxu0 0.0
    %133 = vmatpush1.msra.mxu0 0.0
    %134 = vmatprep.subr.mxu0 0.0
    %135 = vmatpush1.msra.mxu0 0.0
    %136 = vmatprep.mubr.f32.mxu0 0.0
    %137 = vmatmul.mubr.f32.gmra.mrb[0].mxu0 %v67
    %v138 = vpop.f32.mrb[0].mxu0
    %v139 = vadd.f32 0.0, %v138
    %v140 = vpop.f32.mrb[0].mxu0
    %141 = vmatprep.mubr.f32.mxu0 0.0
    %142 = vmatmul.mubr.f32.gmra.mrb[0].mxu0 %v70
    %v143 = vpop.f32.mrb[0].mxu0
    %v144 = vadd.f32 0.0, %v143
    %v145 = vpop.f32.mrb[0].mxu0
    %146 = vdwg.mxu0
    %v147 = vlaneseq
    %v148 = vshrl.u32 %v147, 7
    %v149 = vlaneseq
    %v150 = vand.u32 %v149, 127
    %vm151 = vcmp.ge.s32.totalorder %v148, %v150
    %153 = vrot.lane.b32.xlu0 %v139, 96
    %v154 = vpop.permute.xlu0 %153
    %vm155 = vcmask 64512
    %v156 = vsel %vm155, %v139, 0
    %v158 = vsel %vm155, %v154, 0
    %160 = vmatprep.subr.mxu0 0.0
    %161 = vmatpush1.xpose.msra.mxu0 %v158
    %162 = vmatprep.subr.mxu0 0.0
    %163 = vmatpush1.xpose.msra.mxu0 0.0
    %164 = vmatprep.subr.mxu0 0.0
    %165 = vmatpush1.xpose.msra.mxu0 0.0
    %166 = vmatprep.subr.mxu0 0.0
    %167 = vmatpush1.xpose.msra.mxu0 0.0
    %168 = vmatprep.subr.mxu0 0.0
    %169 = vmatpush1.xpose.msra.mxu0 0.0
    %170 = vmatprep.subr.mxu0 0.0
    %171 = vmatpush1.xpose.msra.mxu0 0.0
    %172 = vmatprep.subr.mxu0 0.0
    %173 = vmatpush1.xpose.msra.mxu0 0.0
    %174 = vmatprep.subr.mxu0 0.0
    %175 = vmatpush1.xpose.msra.mxu0 0.0
    %176 = vmatprep.subr.mxu0 0.0
    %177 = vmatpush1.xpose.msra.mxu0 0.0
    %178 = vmatprep.subr.mxu0 0.0
    %179 = vmatpush1.xpose.msra.mxu0 0.0
    %180 = vmatprep.subr.mxu0 0.0
    %181 = vmatpush1.xpose.msra.mxu0 0.0
    %182 = vmatprep.subr.mxu0 0.0
    %183 = vmatpush1.xpose.msra.mxu0 0.0
    %184 = vmatprep.subr.mxu0 0.0
    %185 = vmatpush1.xpose.msra.mxu0 0.0
    %186 = vmatprep.subr.mxu0 0.0
    %187 = vmatpush1.xpose.msra.mxu0 0.0
    %188 = vmatprep.subr.mxu0 0.0
    %189 = vmatpush1.xpose.msra.mxu0 0.0
    %190 = vmatprep.subr.mxu0 0.0
    %191 = vmatpush1.xpose.msra.mxu0 0.0
    %192 = vmatprep.subr.mxu0 0.0
    %193 = vmatpush1.xpose.msra.mxu0 0.0
    %194 = vmatprep.subr.mxu0 0.0
    %195 = vmatpush1.xpose.msra.mxu0 0.0
    %196 = vmatprep.subr.mxu0 0.0
    %197 = vmatpush1.xpose.msra.mxu0 0.0
    %198 = vmatprep.subr.mxu0 0.0
    %199 = vmatpush1.xpose.msra.mxu0 0.0
    %200 = vmatprep.subr.mxu0 0.0
    %201 = vmatpush1.xpose.msra.mxu0 0.0
    %202 = vmatprep.subr.mxu0 0.0
    %203 = vmatpush1.xpose.msra.mxu0 0.0
    %204 = vmatprep.subr.mxu0 0.0
    %205 = vmatpush1.xpose.msra.mxu0 0.0
    %206 = vmatprep.subr.mxu0 0.0
    %207 = vmatpush1.xpose.msra.mxu0 0.0
    %208 = vmatprep.subr.mxu0 0.0
    %209 = vmatpush1.xpose.msra.mxu0 0.0
    %210 = vmatprep.subr.mxu0 0.0
    %211 = vmatpush1.xpose.msra.mxu0 0.0
    %212 = vmatprep.subr.mxu0 0.0
    %213 = vmatpush1.xpose.msra.mxu0 0.0
    %214 = vmatprep.subr.mxu0 0.0
    %215 = vmatpush1.xpose.msra.mxu0 0.0
    %216 = vmatprep.subr.mxu0 0.0
    %217 = vmatpush1.xpose.msra.mxu0 0.0
    %218 = vmatprep.subr.mxu0 0.0
    %219 = vmatpush1.xpose.msra.mxu0 0.0
    %220 = vmatprep.subr.mxu0 0.0
    %221 = vmatpush1.xpose.msra.mxu0 0.0
    %222 = vmatprep.subr.mxu0 0.0
    %223 = vmatpush1.xpose.msra.mxu0 0.0
    %224 = vmatprep.mubr.f32.mxu0 0.0
    %225 = vmatmul.mubr.f32.gmra.mrb[0].mxu0 %v156
    %v226 = vpop.f32.mrb[0].mxu0
    %v227 = vadd.f32 0.0, %v226
    %v228 = vpop.f32.mrb[0].mxu0
    %229 = vdwg.mxu0
    %231 = vrot.lane.b32.xlu0 %v144, 96
    %v232 = vpop.permute.xlu0 %231
    %v233 = vsel %vm155, %v144, 0
    %v235 = vsel %vm155, %v232, 0
    %237 = vmatprep.subr.mxu0 0.0
    %238 = vmatpush1.xpose.msra.mxu0 %v235
    %239 = vmatprep.subr.mxu0 0.0
    %240 = vmatpush1.xpose.msra.mxu0 0.0
    %241 = vmatprep.subr.mxu0 0.0
    %242 = vmatpush1.xpose.msra.mxu0 0.0
    %243 = vmatprep.subr.mxu0 0.0
    %244 = vmatpush1.xpose.msra.mxu0 0.0
    %245 = vmatprep.subr.mxu0 0.0
    %246 = vmatpush1.xpose.msra.mxu0 0.0
    %247 = vmatprep.subr.mxu0 0.0
    %248 = vmatpush1.xpose.msra.mxu0 0.0
    %249 = vmatprep.subr.mxu0 0.0
    %250 = vmatpush1.xpose.msra.mxu0 0.0
    %251 = vmatprep.subr.mxu0 0.0
    %252 = vmatpush1.xpose.msra.mxu0 0.0
    %253 = vmatprep.subr.mxu0 0.0
    %254 = vmatpush1.xpose.msra.mxu0 0.0
    %255 = vmatprep.subr.mxu0 0.0
    %256 = vmatpush1.xpose.msra.mxu0 0.0
    %257 = vmatprep.subr.mxu0 0.0
    %258 = vmatpush1.xpose.msra.mxu0 0.0
    %259 = vmatprep.subr.mxu0 0.0
    %260 = vmatpush1.xpose.msra.mxu0 0.0
    %261 = vmatprep.subr.mxu0 0.0
    %262 = vmatpush1.xpose.msra.mxu0 0.0
    %263 = vmatprep.subr.mxu0 0.0
    %264 = vmatpush1.xpose.msra.mxu0 0.0
    %265 = vmatprep.subr.mxu0 0.0
    %266 = vmatpush1.xpose.msra.mxu0 0.0
    %267 = vmatprep.subr.mxu0 0.0
    %268 = vmatpush1.xpose.msra.mxu0 0.0
    %269 = vmatprep.subr.mxu0 0.0
    %270 = vmatpush1.xpose.msra.mxu0 0.0
    %271 = vmatprep.subr.mxu0 0.0
    %272 = vmatpush1.xpose.msra.mxu0 0.0
    %273 = vmatprep.subr.mxu0 0.0
    %274 = vmatpush1.xpose.msra.mxu0 0.0
    %275 = vmatprep.subr.mxu0 0.0
    %276 = vmatpush1.xpose.msra.mxu0 0.0
    %277 = vmatprep.subr.mxu0 0.0
    %278 = vmatpush1.xpose.msra.mxu0 0.0
    %279 = vmatprep.subr.mxu0 0.0
    %280 = vmatpush1.xpose.msra.mxu0 0.0
    %281 = vmatprep.subr.mxu0 0.0
    %282 = vmatpush1.xpose.msra.mxu0 0.0
    %283 = vmatprep.subr.mxu0 0.0
    %284 = vmatpush1.xpose.msra.mxu0 0.0
    %285 = vmatprep.subr.mxu0 0.0
    %286 = vmatpush1.xpose.msra.mxu0 0.0
    %287 = vmatprep.subr.mxu0 0.0
    %288 = vmatpush1.xpose.msra.mxu0 0.0
    %289 = vmatprep.subr.mxu0 0.0
    %290 = vmatpush1.xpose.msra.mxu0 0.0
    %291 = vmatprep.subr.mxu0 0.0
    %292 = vmatpush1.xpose.msra.mxu0 0.0
    %293 = vmatprep.subr.mxu0 0.0
    %294 = vmatpush1.xpose.msra.mxu0 0.0
    %295 = vmatprep.subr.mxu0 0.0
    %296 = vmatpush1.xpose.msra.mxu0 0.0
    %297 = vmatprep.subr.mxu0 0.0
    %298 = vmatpush1.xpose.msra.mxu0 0.0
    %299 = vmatprep.subr.mxu0 0.0
    %300 = vmatpush1.xpose.msra.mxu0 0.0
    %301 = vmatprep.mubr.f32.mxu0 0.0
    %302 = vmatmul.mubr.f32.gmra.mrb[0].mxu0 %v233
    %v303 = vpop.f32.mrb[0].mxu0
    %v304 = vadd.f32 0.0, %v303
    %v305 = vpop.f32.mrb[0].mxu0
    %306 = vdwg.mxu0
    %v307 = vsel %vm151, %v227, -inf
    %v308 = vsel %vm151, %v304, -inf
    %v309 = vsel %vm155, %v307, -inf
    %310 = vmax.xlane.f32.xlu0 %v309
    %v311 = vpop.xlane.xlu0 %310
    %v312 = vsel %vm155, %v308, -inf
    %313 = vmax.xlane.f32.xlu0 %v312
    %v314 = vpop.xlane.xlu0 %313
    %v315 = vsub.f32 %v307, %v311
    %v316 = vsub.f32 %v308, %v314
    %v317 = vmul.f32 %v315, 1.442695
    %v318 = vpow.pop %v317
    %v319 = vmul.f32 %v316, 1.442695
    %v320 = vpow.pop %v319
    %v321 = vsel %vm155, %v318, 0.0
    %322 = vadd.xlane.f32.xlu0 %v321
    %v323 = vpop.xlane.xlu0 %322
    %v324 = vsel %vm155, %v320, 0.0
    %325 = vadd.xlane.f32.xlu0 %v324
    %v326 = vpop.xlane.xlu0 %325
    %v327 = vrcp.pop %v323
    %v328 = vrcp.pop %v326
    %v329 = vmul.f32 %v318, %v327
    %v330 = vmul.f32 %v320, %v328
    %331 = vrot.lane.b32.xlu0 %v139, 64
    %v332 = vpop.permute.xlu0 %331
    %v335 = vsel %vm155, %v329, 0
    %337 = vmatprep.subr.mxu0 0.0
    %338 = vmatpush1.msra.mxu0 %v332
    %339 = vmatprep.subr.mxu0 0.0
    %340 = vmatpush1.msra.mxu0 0.0
    %341 = vmatprep.subr.mxu0 0.0
    %342 = vmatpush1.msra.mxu0 0.0
    %343 = vmatprep.subr.mxu0 0.0
    %344 = vmatpush1.msra.mxu0 0.0
    %345 = vmatprep.subr.mxu0 0.0
    %346 = vmatpush1.msra.mxu0 0.0
    %347 = vmatprep.subr.mxu0 0.0
    %348 = vmatpush1.msra.mxu0 0.0
    %349 = vmatprep.subr.mxu0 0.0
    %350 = vmatpush1.msra.mxu0 0.0
    %351 = vmatprep.subr.mxu0 0.0
    %352 = vmatpush1.msra.mxu0 0.0
    %353 = vmatprep.subr.mxu0 0.0
    %354 = vmatpush1.msra.mxu0 0.0
    %355 = vmatprep.subr.mxu0 0.0
    %356 = vmatpush1.msra.mxu0 0.0
    %357 = vmatprep.subr.mxu0 0.0
    %358 = vmatpush1.msra.mxu0 0.0
    %359 = vmatprep.subr.mxu0 0.0
    %360 = vmatpush1.msra.mxu0 0.0
    %361 = vmatprep.subr.mxu0 0.0
    %362 = vmatpush1.msra.mxu0 0.0
    %363 = vmatprep.subr.mxu0 0.0
    %364 = vmatpush1.msra.mxu0 0.0
    %365 = vmatprep.subr.mxu0 0.0
    %366 = vmatpush1.msra.mxu0 0.0
    %367 = vmatprep.subr.mxu0 0.0
    %368 = vmatpush1.msra.mxu0 0.0
    %369 = vmatprep.subr.mxu0 0.0
    %370 = vmatpush1.msra.mxu0 0.0
    %371 = vmatprep.subr.mxu0 0.0
    %372 = vmatpush1.msra.mxu0 0.0
    %373 = vmatprep.subr.mxu0 0.0
    %374 = vmatpush1.msra.mxu0 0.0
    %375 = vmatprep.subr.mxu0 0.0
    %376 = vmatpush1.msra.mxu0 0.0
    %377 = vmatprep.subr.mxu0 0.0
    %378 = vmatpush1.msra.mxu0 0.0
    %379 = vmatprep.subr.mxu0 0.0
    %380 = vmatpush1.msra.mxu0 0.0
    %381 = vmatprep.subr.mxu0 0.0
    %382 = vmatpush1.msra.mxu0 0.0
    %383 = vmatprep.subr.mxu0 0.0
    %384 = vmatpush1.msra.mxu0 0.0
    %385 = vmatprep.subr.mxu0 0.0
    %386 = vmatpush1.msra.mxu0 0.0
    %387 = vmatprep.subr.mxu0 0.0
    %388 = vmatpush1.msra.mxu0 0.0
    %389 = vmatprep.subr.mxu0 0.0
    %390 = vmatpush1.msra.mxu0 0.0
    %391 = vmatprep.subr.mxu0 0.0
    %392 = vmatpush1.msra.mxu0 0.0
    %393 = vmatprep.subr.mxu0 0.0
    %394 = vmatpush1.msra.mxu0 0.0
    %395 = vmatprep.subr.mxu0 0.0
    %396 = vmatpush1.msra.mxu0 0.0
    %397 = vmatprep.subr.mxu0 0.0
    %398 = vmatpush1.msra.mxu0 0.0
    %399 = vmatprep.subr.mxu0 0.0
    %400 = vmatpush1.msra.mxu0 0.0
    %401 = vmatprep.mubr.f32.mxu0 0.0
    %402 = vmatmul.mubr.f32.gmra.mrb[0].mxu0 %v335
    %v403 = vpop.f32.mrb[0].mxu0
    %v404 = vadd.f32 0.0, %v403
    %v405 = vpop.f32.mrb[0].mxu0
    %406 = vdwg.mxu0
    %407 = vrot.lane.b32.xlu0 %v144, 64
    %v408 = vpop.permute.xlu0 %407
    %v411 = vsel %vm155, %v330, 0
    %413 = vmatprep.subr.mxu0 0.0
    %414 = vmatpush1.msra.mxu0 %v408
    %415 = vmatprep.subr.mxu0 0.0
    %416 = vmatpush1.msra.mxu0 0.0
    %417 = vmatprep.subr.mxu0 0.0
    %418 = vmatpush1.msra.mxu0 0.0
    %419 = vmatprep.subr.mxu0 0.0
    %420 = vmatpush1.msra.mxu0 0.0
    %421 = vmatprep.subr.mxu0 0.0
    %422 = vmatpush1.msra.mxu0 0.0
    %423 = vmatprep.subr.mxu0 0.0
    %424 = vmatpush1.msra.mxu0 0.0
    %425 = vmatprep.subr.mxu0 0.0
    %426 = vmatpush1.msra.mxu0 0.0
    %427 = vmatprep.subr.mxu0 0.0
    %428 = vmatpush1.msra.mxu0 0.0
    %429 = vmatprep.subr.mxu0 0.0
    %430 = vmatpush1.msra.mxu0 0.0
    %431 = vmatprep.subr.mxu0 0.0
    %432 = vmatpush1.msra.mxu0 0.0
    %433 = vmatprep.subr.mxu0 0.0
    %434 = vmatpush1.msra.mxu0 0.0
    %435 = vmatprep.subr.mxu0 0.0
    %436 = vmatpush1.msra.mxu0 0.0
    %437 = vmatprep.subr.mxu0 0.0
    %438 = vmatpush1.msra.mxu0 0.0
    %439 = vmatprep.subr.mxu0 0.0
    %440 = vmatpush1.msra.mxu0 0.0
    %441 = vmatprep.subr.mxu0 0.0
    %442 = vmatpush1.msra.mxu0 0.0
    %443 = vmatprep.subr.mxu0 0.0
    %444 = vmatpush1.msra.mxu0 0.0
    %445 = vmatprep.subr.mxu0 0.0
    %446 = vmatpush1.msra.mxu0 0.0
    %447 = vmatprep.subr.mxu0 0.0
    %448 = vmatpush1.msra.mxu0 0.0
    %449 = vmatprep.subr.mxu0 0.0
    %450 = vmatpush1.msra.mxu0 0.0
    %451 = vmatprep.subr.mxu0 0.0
    %452 = vmatpush1.msra.mxu0 0.0
    %453 = vmatprep.subr.mxu0 0.0
    %454 = vmatpush1.msra.mxu0 0.0
    %455 = vmatprep.subr.mxu0 0.0
    %456 = vmatpush1.msra.mxu0 0.0
    %457 = vmatprep.subr.mxu0 0.0
    %458 = vmatpush1.msra.mxu0 0.0
    %459 = vmatprep.subr.mxu0 0.0
    %460 = vmatpush1.msra.mxu0 0.0
    %461 = vmatprep.subr.mxu0 0.0
    %462 = vmatpush1.msra.mxu0 0.0
    %463 = vmatprep.subr.mxu0 0.0
    %464 = vmatpush1.msra.mxu0 0.0
    %465 = vmatprep.subr.mxu0 0.0
    %466 = vmatpush1.msra.mxu0 0.0
    %467 = vmatprep.subr.mxu0 0.0
    %468 = vmatpush1.msra.mxu0 0.0
    %469 = vmatprep.subr.mxu0 0.0
    %470 = vmatpush1.msra.mxu0 0.0
    %471 = vmatprep.subr.mxu0 0.0
    %472 = vmatpush1.msra.mxu0 0.0
    %473 = vmatprep.subr.mxu0 0.0
    %474 = vmatpush1.msra.mxu0 0.0
    %475 = vmatprep.subr.mxu0 0.0
    %476 = vmatpush1.msra.mxu0 0.0
    %477 = vmatprep.mubr.f32.mxu0 0.0
    %478 = vmatmul.mubr.f32.gmra.mrb[0].mxu0 %v411
    %v479 = vpop.f32.mrb[0].mxu0
    %v480 = vadd.f32 0.0, %v479
    %v481 = vpop.f32.mrb[0].mxu0
    %482 = vdwg.mxu0
    %483 = vst.msk [vmem:[#allocation2] sm:$0xff] %vm155, %v404
    %484 = vst.msk [vmem:[#allocation2 + $0x8] sm:$0xff] %vm155, %v480
    %485 = vrot.lane.b32.xlu0 %v139, 120
    %v486 = vpop.permute.xlu0 %485
    %487 = vrot.lane.b32.xlu0 %v139, 88
    %v488 = vpop.permute.xlu0 %487
    %v489 = vsel %vm155, %v486, 0
    %v491 = vsel %vm155, %v488, 0
    %493 = vmatprep.subr.mxu0 0.0
    %494 = vmatpush1.xpose.msra.mxu0 %v491
    %495 = vmatprep.subr.mxu0 0.0
    %496 = vmatpush1.xpose.msra.mxu0 0.0
    %497 = vmatprep.subr.mxu0 0.0
    %498 = vmatpush1.xpose.msra.mxu0 0.0
    %499 = vmatprep.subr.mxu0 0.0
    %500 = vmatpush1.xpose.msra.mxu0 0.0
    %501 = vmatprep.subr.mxu0 0.0
    %502 = vmatpush1.xpose.msra.mxu0 0.0
    %503 = vmatprep.subr.mxu0 0.0
    %504 = vmatpush1.xpose.msra.mxu0 0.0
    %505 = vmatprep.subr.mxu0 0.0
    %506 = vmatpush1.xpose.msra.mxu0 0.0
    %507 = vmatprep.subr.mxu0 0.0
    %508 = vmatpush1.xpose.msra.mxu0 0.0
    %509 = vmatprep.subr.mxu0 0.0
    %510 = vmatpush1.xpose.msra.mxu0 0.0
    %511 = vmatprep.subr.mxu0 0.0
    %512 = vmatpush1.xpose.msra.mxu0 0.0
    %513 = vmatprep.subr.mxu0 0.0
    %514 = vmatpush1.xpose.msra.mxu0 0.0
    %515 = vmatprep.subr.mxu0 0.0
    %516 = vmatpush1.xpose.msra.mxu0 0.0
    %517 = vmatprep.subr.mxu0 0.0
    %518 = vmatpush1.xpose.msra.mxu0 0.0
    %519 = vmatprep.subr.mxu0 0.0
    %520 = vmatpush1.xpose.msra.mxu0 0.0
    %521 = vmatprep.subr.mxu0 0.0
    %522 = vmatpush1.xpose.msra.mxu0 0.0
    %523 = vmatprep.subr.mxu0 0.0
    %524 = vmatpush1.xpose.msra.mxu0 0.0
    %525 = vmatprep.subr.mxu0 0.0
    %526 = vmatpush1.xpose.msra.mxu0 0.0
    %527 = vmatprep.subr.mxu0 0.0
    %528 = vmatpush1.xpose.msra.mxu0 0.0
    %529 = vmatprep.subr.mxu0 0.0
    %530 = vmatpush1.xpose.msra.mxu0 0.0
    %531 = vmatprep.subr.mxu0 0.0
    %532 = vmatpush1.xpose.msra.mxu0 0.0
    %533 = vmatprep.subr.mxu0 0.0
    %534 = vmatpush1.xpose.msra.mxu0 0.0
    %535 = vmatprep.subr.mxu0 0.0
    %536 = vmatpush1.xpose.msra.mxu0 0.0
    %537 = vmatprep.subr.mxu0 0.0
    %538 = vmatpush1.xpose.msra.mxu0 0.0
    %539 = vmatprep.subr.mxu0 0.0
    %540 = vmatpush1.xpose.msra.mxu0 0.0
    %541 = vmatprep.subr.mxu0 0.0
    %542 = vmatpush1.xpose.msra.mxu0 0.0
    %543 = vmatprep.subr.mxu0 0.0
    %544 = vmatpush1.xpose.msra.mxu0 0.0
    %545 = vmatprep.subr.mxu0 0.0
    %546 = vmatpush1.xpose.msra.mxu0 0.0
    %547 = vmatprep.subr.mxu0 0.0
    %548 = vmatpush1.xpose.msra.mxu0 0.0
    %549 = vmatprep.subr.mxu0 0.0
    %550 = vmatpush1.xpose.msra.mxu0 0.0
    %551 = vmatprep.subr.mxu0 0.0
    %552 = vmatpush1.xpose.msra.mxu0 0.0
    %553 = vmatprep.subr.mxu0 0.0
    %554 = vmatpush1.xpose.msra.mxu0 0.0
    %555 = vmatprep.subr.mxu0 0.0
    %556 = vmatpush1.xpose.msra.mxu0 0.0
    %557 = vmatprep.mubr.f32.mxu0 0.0
    %558 = vmatmul.mubr.f32.gmra.mrb[0].mxu0 %v489
    %v559 = vpop.f32.mrb[0].mxu0
    %v560 = vadd.f32 0.0, %v559
    %v561 = vpop.f32.mrb[0].mxu0
    %562 = vdwg.mxu0
    %563 = vrot.lane.b32.xlu0 %v144, 120
    %v564 = vpop.permute.xlu0 %563
    %565 = vrot.lane.b32.xlu0 %v144, 88
    %v566 = vpop.permute.xlu0 %565
    %v567 = vsel %vm155, %v564, 0
    %v569 = vsel %vm155, %v566, 0
    %571 = vmatprep.subr.mxu0 0.0
    %572 = vmatpush1.xpose.msra.mxu0 %v569
    %573 = vmatprep.subr.mxu0 0.0
    %574 = vmatpush1.xpose.msra.mxu0 0.0
    %575 = vmatprep.subr.mxu0 0.0
    %576 = vmatpush1.xpose.msra.mxu0 0.0
    %577 = vmatprep.subr.mxu0 0.0
    %578 = vmatpush1.xpose.msra.mxu0 0.0
    %579 = vmatprep.subr.mxu0 0.0
    %580 = vmatpush1.xpose.msra.mxu0 0.0
    %581 = vmatprep.subr.mxu0 0.0
    %582 = vmatpush1.xpose.msra.mxu0 0.0
    %583 = vmatprep.subr.mxu0 0.0
    %584 = vmatpush1.xpose.msra.mxu0 0.0
    %585 = vmatprep.subr.mxu0 0.0
    %586 = vmatpush1.xpose.msra.mxu0 0.0
    %587 = vmatprep.subr.mxu0 0.0
    %588 = vmatpush1.xpose.msra.mxu0 0.0
    %589 = vmatprep.subr.mxu0 0.0
    %590 = vmatpush1.xpose.msra.mxu0 0.0
    %591 = vmatprep.subr.mxu0 0.0
    %592 = vmatpush1.xpose.msra.mxu0 0.0
    %593 = vmatprep.subr.mxu0 0.0
    %594 = vmatpush1.xpose.msra.mxu0 0.0
    %595 = vmatprep.subr.mxu0 0.0
    %596 = vmatpush1.xpose.msra.mxu0 0.0
    %597 = vmatprep.subr.mxu0 0.0
    %598 = vmatpush1.xpose.msra.mxu0 0.0
    %599 = vmatprep.subr.mxu0 0.0
    %600 = vmatpush1.xpose.msra.mxu0 0.0
    %601 = vmatprep.subr.mxu0 0.0
    %602 = vmatpush1.xpose.msra.mxu0 0.0
    %603 = vmatprep.subr.mxu0 0.0
    %604 = vmatpush1.xpose.msra.mxu0 0.0
    %605 = vmatprep.subr.mxu0 0.0
    %606 = vmatpush1.xpose.msra.mxu0 0.0
    %607 = vmatprep.subr.mxu0 0.0
    %608 = vmatpush1.xpose.msra.mxu0 0.0
    %609 = vmatprep.subr.mxu0 0.0
    %610 = vmatpush1.xpose.msra.mxu0 0.0
    %611 = vmatprep.subr.mxu0 0.0
    %612 = vmatpush1.xpose.msra.mxu0 0.0
    %613 = vmatprep.subr.mxu0 0.0
    %614 = vmatpush1.xpose.msra.mxu0 0.0
    %615 = vmatprep.subr.mxu0 0.0
    %616 = vmatpush1.xpose.msra.mxu0 0.0
    %617 = vmatprep.subr.mxu0 0.0
    %618 = vmatpush1.xpose.msra.mxu0 0.0
    %619 = vmatprep.subr.mxu0 0.0
    %620 = vmatpush1.xpose.msra.mxu0 0.0
    %621 = vmatprep.subr.mxu0 0.0
    %622 = vmatpush1.xpose.msra.mxu0 0.0
    %623 = vmatprep.subr.mxu0 0.0
    %624 = vmatpush1.xpose.msra.mxu0 0.0
    %625 = vmatprep.subr.mxu0 0.0
    %626 = vmatpush1.xpose.msra.mxu0 0.0
    %627 = vmatprep.subr.mxu0 0.0
    %628 = vmatpush1.xpose.msra.mxu0 0.0
    %629 = vmatprep.subr.mxu0 0.0
    %630 = vmatpush1.xpose.msra.mxu0 0.0
    %631 = vmatprep.subr.mxu0 0.0
    %632 = vmatpush1.xpose.msra.mxu0 0.0
    %633 = vmatprep.subr.mxu0 0.0
    %634 = vmatpush1.xpose.msra.mxu0 0.0
    %635 = vmatprep.mubr.f32.mxu0 0.0
    %636 = vmatmul.mubr.f32.gmra.mrb[0].mxu0 %v567
    %v637 = vpop.f32.mrb[0].mxu0
    %v638 = vadd.f32 0.0, %v637
    %v639 = vpop.f32.mrb[0].mxu0
    %640 = vdwg.mxu0
    %v641 = vsel %vm151, %v560, -inf
    %v642 = vsel %vm151, %v638, -inf
    %v643 = vsel %vm155, %v641, -inf
    %644 = vmax.xlane.f32.xlu0 %v643
    %v645 = vpop.xlane.xlu0 %644
    %v646 = vsel %vm155, %v642, -inf
    %647 = vmax.xlane.f32.xlu0 %v646
    %v648 = vpop.xlane.xlu0 %647
    %v649 = vsub.f32 %v641, %v645
    %v650 = vsub.f32 %v642, %v648
    %v651 = vmul.f32 %v649, 1.442695
    %v652 = vpow.pop %v651
    %v653 = vmul.f32 %v650, 1.442695
    %v654 = vpow.pop %v653
    %v655 = vsel %vm155, %v652, 0.0
    %656 = vadd.xlane.f32.xlu0 %v655
    %v657 = vpop.xlane.xlu0 %656
    %v658 = vsel %vm155, %v654, 0.0
    %659 = vadd.xlane.f32.xlu0 %v658
    %v660 = vpop.xlane.xlu0 %659
    %v661 = vrcp.pop %v657
    %v662 = vrcp.pop %v660
    %v663 = vmul.f32 %v652, %v661
    %v664 = vmul.f32 %v654, %v662
    %665 = vrot.lane.b32.xlu0 %v139, 56
    %v666 = vpop.permute.xlu0 %665
    %v669 = vsel %vm155, %v663, 0
    %671 = vmatprep.subr.mxu0 0.0
    %672 = vmatpush1.msra.mxu0 %v666
    %673 = vmatprep.subr.mxu0 0.0
    %674 = vmatpush1.msra.mxu0 0.0
    %675 = vmatprep.subr.mxu0 0.0
    %676 = vmatpush1.msra.mxu0 0.0
    %677 = vmatprep.subr.mxu0 0.0
    %678 = vmatpush1.msra.mxu0 0.0
    %679 = vmatprep.subr.mxu0 0.0
    %680 = vmatpush1.msra.mxu0 0.0
    %681 = vmatprep.subr.mxu0 0.0
    %682 = vmatpush1.msra.mxu0 0.0
    %683 = vmatprep.subr.mxu0 0.0
    %684 = vmatpush1.msra.mxu0 0.0
    %685 = vmatprep.subr.mxu0 0.0
    %686 = vmatpush1.msra.mxu0 0.0
    %687 = vmatprep.subr.mxu0 0.0
    %688 = vmatpush1.msra.mxu0 0.0
    %689 = vmatprep.subr.mxu0 0.0
    %690 = vmatpush1.msra.mxu0 0.0
    %691 = vmatprep.subr.mxu0 0.0
    %692 = vmatpush1.msra.mxu0 0.0
    %693 = vmatprep.subr.mxu0 0.0
    %694 = vmatpush1.msra.mxu0 0.0
    %695 = vmatprep.subr.mxu0 0.0
    %696 = vmatpush1.msra.mxu0 0.0
    %697 = vmatprep.subr.mxu0 0.0
    %698 = vmatpush1.msra.mxu0 0.0
    %699 = vmatprep.subr.mxu0 0.0
    %700 = vmatpush1.msra.mxu0 0.0
    %701 = vmatprep.subr.mxu0 0.0
    %702 = vmatpush1.msra.mxu0 0.0
    %703 = vmatprep.subr.mxu0 0.0
    %704 = vmatpush1.msra.mxu0 0.0
    %705 = vmatprep.subr.mxu0 0.0
    %706 = vmatpush1.msra.mxu0 0.0
    %707 = vmatprep.subr.mxu0 0.0
    %708 = vmatpush1.msra.mxu0 0.0
    %709 = vmatprep.subr.mxu0 0.0
    %710 = vmatpush1.msra.mxu0 0.0
    %711 = vmatprep.subr.mxu0 0.0
    %712 = vmatpush1.msra.mxu0 0.0
    %713 = vmatprep.subr.mxu0 0.0
    %714 = vmatpush1.msra.mxu0 0.0
    %715 = vmatprep.subr.mxu0 0.0
    %716 = vmatpush1.msra.mxu0 0.0
    %717 = vmatprep.subr.mxu0 0.0
    %718 = vmatpush1.msra.mxu0 0.0
    %719 = vmatprep.subr.mxu0 0.0
    %720 = vmatpush1.msra.mxu0 0.0
    %721 = vmatprep.subr.mxu0 0.0
    %722 = vmatpush1.msra.mxu0 0.0
    %723 = vmatprep.subr.mxu0 0.0
    %724 = vmatpush1.msra.mxu0 0.0
    %725 = vmatprep.subr.mxu0 0.0
    %726 = vmatpush1.msra.mxu0 0.0
    %727 = vmatprep.subr.mxu0 0.0
    %728 = vmatpush1.msra.mxu0 0.0
    %729 = vmatprep.subr.mxu0 0.0
    %730 = vmatpush1.msra.mxu0 0.0
    %731 = vmatprep.subr.mxu0 0.0
    %732 = vmatpush1.msra.mxu0 0.0
    %733 = vmatprep.subr.mxu0 0.0
    %734 = vmatpush1.msra.mxu0 0.0
    %735 = vmatprep.mubr.f32.mxu0 0.0
    %736 = vmatmul.mubr.f32.gmra.mrb[0].mxu0 %v669
    %v737 = vpop.f32.mrb[0].mxu0
    %v738 = vadd.f32 0.0, %v737
    %v739 = vpop.f32.mrb[0].mxu0
    %740 = vdwg.mxu0
    %741 = vrot.lane.b32.xlu0 %v144, 56
    %v742 = vpop.permute.xlu0 %741
    %v745 = vsel %vm155, %v664, 0
    %747 = vmatprep.subr.mxu0 0.0
    %748 = vmatpush1.msra.mxu0 %v742
    %749 = vmatprep.subr.mxu0 0.0
    %750 = vmatpush1.msra.mxu0 0.0
    %751 = vmatprep.subr.mxu0 0.0
    %752 = vmatpush1.msra.mxu0 0.0
    %753 = vmatprep.subr.mxu0 0.0
    %754 = vmatpush1.msra.mxu0 0.0
    %755 = vmatprep.subr.mxu0 0.0
    %756 = vmatpush1.msra.mxu0 0.0
    %757 = vmatprep.subr.mxu0 0.0
    %758 = vmatpush1.msra.mxu0 0.0
    %759 = vmatprep.subr.mxu0 0.0
    %760 = vmatpush1.msra.mxu0 0.0
    %761 = vmatprep.subr.mxu0 0.0
    %762 = vmatpush1.msra.mxu0 0.0
    %763 = vmatprep.subr.mxu0 0.0
    %764 = vmatpush1.msra.mxu0 0.0
    %765 = vmatprep.subr.mxu0 0.0
    %766 = vmatpush1.msra.mxu0 0.0
    %767 = vmatprep.subr.mxu0 0.0
    %768 = vmatpush1.msra.mxu0 0.0
    %769 = vmatprep.subr.mxu0 0.0
    %770 = vmatpush1.msra.mxu0 0.0
    %771 = vmatprep.subr.mxu0 0.0
    %772 = vmatpush1.msra.mxu0 0.0
    %773 = vmatprep.subr.mxu0 0.0
    %774 = vmatpush1.msra.mxu0 0.0
    %775 = vmatprep.subr.mxu0 0.0
    %776 = vmatpush1.msra.mxu0 0.0
    %777 = vmatprep.subr.mxu0 0.0
    %778 = vmatpush1.msra.mxu0 0.0
    %779 = vmatprep.subr.mxu0 0.0
    %780 = vmatpush1.msra.mxu0 0.0
    %781 = vmatprep.subr.mxu0 0.0
    %782 = vmatpush1.msra.mxu0 0.0
    %783 = vmatprep.subr.mxu0 0.0
    %784 = vmatpush1.msra.mxu0 0.0
    %785 = vmatprep.subr.mxu0 0.0
    %786 = vmatpush1.msra.mxu0 0.0
    %787 = vmatprep.subr.mxu0 0.0
    %788 = vmatpush1.msra.mxu0 0.0
    %789 = vmatprep.subr.mxu0 0.0
    %790 = vmatpush1.msra.mxu0 0.0
    %791 = vmatprep.subr.mxu0 0.0
    %792 = vmatpush1.msra.mxu0 0.0
    %793 = vmatprep.subr.mxu0 0.0
    %794 = vmatpush1.msra.mxu0 0.0
    %795 = vmatprep.subr.mxu0 0.0
    %796 = vmatpush1.msra.mxu0 0.0
    %797 = vmatprep.subr.mxu0 0.0
    %798 = vmatpush1.msra.mxu0 0.0
    %799 = vmatprep.subr.mxu0 0.0
    %800 = vmatpush1.msra.mxu0 0.0
    %801 = vmatprep.subr.mxu0 0.0
    %802 = vmatpush1.msra.mxu0 0.0
    %803 = vmatprep.subr.mxu0 0.0
    %804 = vmatpush1.msra.mxu0 0.0
    %805 = vmatprep.subr.mxu0 0.0
    %806 = vmatpush1.msra.mxu0 0.0
    %807 = vmatprep.subr.mxu0 0.0
    %808 = vmatpush1.msra.mxu0 0.0
    %809 = vmatprep.subr.mxu0 0.0
    %810 = vmatpush1.msra.mxu0 0.0
    %811 = vmatprep.mubr.f32.mxu0 0.0
    %812 = vmatmul.mubr.f32.gmra.mrb[0].mxu0 %v745
    %v813 = vpop.f32.mrb[0].mxu0
    %v814 = vadd.f32 0.0, %v813
    %v815 = vpop.f32.mrb[0].mxu0
    %816 = vdwg.mxu0
    %819 = vrot.lane.b32.xlu0 %v738, 8
    %v820 = vpop.permute.xlu0 %819
    %821 = vrot.lane.b32.xlu0 %v814, 8
    %v822 = vpop.permute.xlu0 %821
    %vm825 = vcmask 130112
    %826 = vst.msk [vmem:[#allocation2] sm:$0xff] %vm825, %v820
    %827 = vst.msk [vmem:[#allocation2 + $0x8] sm:$0xff] %vm825, %v822
    %828 = vrot.lane.b32.xlu0 %v139, 112
    %v829 = vpop.permute.xlu0 %828
    %830 = vrot.lane.b32.xlu0 %v139, 80
    %v831 = vpop.permute.xlu0 %830
    %v832 = vsel %vm155, %v829, 0
    %v834 = vsel %vm155, %v831, 0
    %836 = vmatprep.subr.mxu0 0.0
    %837 = vmatpush1.xpose.msra.mxu0 %v834
    %838 = vmatprep.subr.mxu0 0.0
    %839 = vmatpush1.xpose.msra.mxu0 0.0
    %840 = vmatprep.subr.mxu0 0.0
    %841 = vmatpush1.xpose.msra.mxu0 0.0
    %842 = vmatprep.subr.mxu0 0.0
    %843 = vmatpush1.xpose.msra.mxu0 0.0
    %844 = vmatprep.subr.mxu0 0.0
    %845 = vmatpush1.xpose.msra.mxu0 0.0
    %846 = vmatprep.subr.mxu0 0.0
    %847 = vmatpush1.xpose.msra.mxu0 0.0
    %848 = vmatprep.subr.mxu0 0.0
    %849 = vmatpush1.xpose.msra.mxu0 0.0
    %850 = vmatprep.subr.mxu0 0.0
    %851 = vmatpush1.xpose.msra.mxu0 0.0
    %852 = vmatprep.subr.mxu0 0.0
    %853 = vmatpush1.xpose.msra.mxu0 0.0
    %854 = vmatprep.subr.mxu0 0.0
    %855 = vmatpush1.xpose.msra.mxu0 0.0
    %856 = vmatprep.subr.mxu0 0.0
    %857 = vmatpush1.xpose.msra.mxu0 0.0
    %858 = vmatprep.subr.mxu0 0.0
    %859 = vmatpush1.xpose.msra.mxu0 0.0
    %860 = vmatprep.subr.mxu0 0.0
    %861 = vmatpush1.xpose.msra.mxu0 0.0
    %862 = vmatprep.subr.mxu0 0.0
    %863 = vmatpush1.xpose.msra.mxu0 0.0
    %864 = vmatprep.subr.mxu0 0.0
    %865 = vmatpush1.xpose.msra.mxu0 0.0
    %866 = vmatprep.subr.mxu0 0.0
    %867 = vmatpush1.xpose.msra.mxu0 0.0
    %868 = vmatprep.subr.mxu0 0.0
    %869 = vmatpush1.xpose.msra.mxu0 0.0
    %870 = vmatprep.subr.mxu0 0.0
    %871 = vmatpush1.xpose.msra.mxu0 0.0
    %872 = vmatprep.subr.mxu0 0.0
    %873 = vmatpush1.xpose.msra.mxu0 0.0
    %874 = vmatprep.subr.mxu0 0.0
    %875 = vmatpush1.xpose.msra.mxu0 0.0
    %876 = vmatprep.subr.mxu0 0.0
    %877 = vmatpush1.xpose.msra.mxu0 0.0
    %878 = vmatprep.subr.mxu0 0.0
    %879 = vmatpush1.xpose.msra.mxu0 0.0
    %880 = vmatprep.subr.mxu0 0.0
    %881 = vmatpush1.xpose.msra.mxu0 0.0
    %882 = vmatprep.subr.mxu0 0.0
    %883 = vmatpush1.xpose.msra.mxu0 0.0
    %884 = vmatprep.subr.mxu0 0.0
    %885 = vmatpush1.xpose.msra.mxu0 0.0
    %886 = vmatprep.subr.mxu0 0.0
    %887 = vmatpush1.xpose.msra.mxu0 0.0
    %888 = vmatprep.subr.mxu0 0.0
    %889 = vmatpush1.xpose.msra.mxu0 0.0
    %890 = vmatprep.subr.mxu0 0.0
    %891 = vmatpush1.xpose.msra.mxu0 0.0
    %892 = vmatprep.subr.mxu0 0.0
    %893 = vmatpush1.xpose.msra.mxu0 0.0
    %894 = vmatprep.subr.mxu0 0.0
    %895 = vmatpush1.xpose.msra.mxu0 0.0
    %896 = vmatprep.subr.mxu0 0.0
    %897 = vmatpush1.xpose.msra.mxu0 0.0
    %898 = vmatprep.subr.mxu0 0.0
    %899 = vmatpush1.xpose.msra.mxu0 0.0
    %900 = vmatprep.mubr.f32.mxu0 0.0
    %901 = vmatmul.mubr.f32.gmra.mrb[0].mxu0 %v832
    %v902 = vpop.f32.mrb[0].mxu0
    %v903 = vadd.f32 0.0, %v902
    %v904 = vpop.f32.mrb[0].mxu0
    %905 = vdwg.mxu0
    %906 = vrot.lane.b32.xlu0 %v144, 112
    %v907 = vpop.permute.xlu0 %906
    %908 = vrot.lane.b32.xlu0 %v144, 80
    %v909 = vpop.permute.xlu0 %908
    %v910 = vsel %vm155, %v907, 0
    %v912 = vsel %vm155, %v909, 0
    %914 = vmatprep.subr.mxu0 0.0
    %915 = vmatpush1.xpose.msra.mxu0 %v912
    %916 = vmatprep.subr.mxu0 0.0
    %917 = vmatpush1.xpose.msra.mxu0 0.0
    %918 = vmatprep.subr.mxu0 0.0
    %919 = vmatpush1.xpose.msra.mxu0 0.0
    %920 = vmatprep.subr.mxu0 0.0
    %921 = vmatpush1.xpose.msra.mxu0 0.0
    %922 = vmatprep.subr.mxu0 0.0
    %923 = vmatpush1.xpose.msra.mxu0 0.0
    %924 = vmatprep.subr.mxu0 0.0
    %925 = vmatpush1.xpose.msra.mxu0 0.0
    %926 = vmatprep.subr.mxu0 0.0
    %927 = vmatpush1.xpose.msra.mxu0 0.0
    %928 = vmatprep.subr.mxu0 0.0
    %929 = vmatpush1.xpose.msra.mxu0 0.0
    %930 = vmatprep.subr.mxu0 0.0
    %931 = vmatpush1.xpose.msra.mxu0 0.0
    %932 = vmatprep.subr.mxu0 0.0
    %933 = vmatpush1.xpose.msra.mxu0 0.0
    %934 = vmatprep.subr.mxu0 0.0
    %935 = vmatpush1.xpose.msra.mxu0 0.0
    %936 = vmatprep.subr.mxu0 0.0
    %937 = vmatpush1.xpose.msra.mxu0 0.0
    %938 = vmatprep.subr.mxu0 0.0
    %939 = vmatpush1.xpose.msra.mxu0 0.0
    %940 = vmatprep.subr.mxu0 0.0
    %941 = vmatpush1.xpose.msra.mxu0 0.0
    %942 = vmatprep.subr.mxu0 0.0
    %943 = vmatpush1.xpose.msra.mxu0 0.0
    %944 = vmatprep.subr.mxu0 0.0
    %945 = vmatpush1.xpose.msra.mxu0 0.0
    %946 = vmatprep.subr.mxu0 0.0
    %947 = vmatpush1.xpose.msra.mxu0 0.0
    %948 = vmatprep.subr.mxu0 0.0
    %949 = vmatpush1.xpose.msra.mxu0 0.0
    %950 = vmatprep.subr.mxu0 0.0
    %951 = vmatpush1.xpose.msra.mxu0 0.0
    %952 = vmatprep.subr.mxu0 0.0
    %953 = vmatpush1.xpose.msra.mxu0 0.0
    %954 = vmatprep.subr.mxu0 0.0
    %955 = vmatpush1.xpose.msra.mxu0 0.0
    %956 = vmatprep.subr.mxu0 0.0
    %957 = vmatpush1.xpose.msra.mxu0 0.0
    %958 = vmatprep.subr.mxu0 0.0
    %959 = vmatpush1.xpose.msra.mxu0 0.0
    %960 = vmatprep.subr.mxu0 0.0
    %961 = vmatpush1.xpose.msra.mxu0 0.0
    %962 = vmatprep.subr.mxu0 0.0
    %963 = vmatpush1.xpose.msra.mxu0 0.0
    %964 = vmatprep.subr.mxu0 0.0
    %965 = vmatpush1.xpose.msra.mxu0 0.0
    %966 = vmatprep.subr.mxu0 0.0
    %967 = vmatpush1.xpose.msra.mxu0 0.0
    %968 = vmatprep.subr.mxu0 0.0
    %969 = vmatpush1.xpose.msra.mxu0 0.0
    %970 = vmatprep.subr.mxu0 0.0
    %971 = vmatpush1.xpose.msra.mxu0 0.0
    %972 = vmatprep.subr.mxu0 0.0
    %973 = vmatpush1.xpose.msra.mxu0 0.0
    %974 = vmatprep.subr.mxu0 0.0
    %975 = vmatpush1.xpose.msra.mxu0 0.0
    %976 = vmatprep.subr.mxu0 0.0
    %977 = vmatpush1.xpose.msra.mxu0 0.0
    %978 = vmatprep.mubr.f32.mxu0 0.0
    %979 = vmatmul.mubr.f32.gmra.mrb[0].mxu0 %v910
    %v980 = vpop.f32.mrb[0].mxu0
    %v981 = vadd.f32 0.0, %v980
    %v982 = vpop.f32.mrb[0].mxu0
    %983 = vdwg.mxu0
    %v984 = vsel %vm151, %v903, -inf
    %v985 = vsel %vm151, %v981, -inf
    %v986 = vsel %vm155, %v984, -inf
    %987 = vmax.xlane.f32.xlu0 %v986
    %v988 = vpop.xlane.xlu0 %987
    %v989 = vsel %vm155, %v985, -inf
    %990 = vmax.xlane.f32.xlu0 %v989
    %v991 = vpop.xlane.xlu0 %990
    %v992 = vsub.f32 %v984, %v988
    %v993 = vsub.f32 %v985, %v991
    %v994 = vmul.f32 %v992, 1.442695
    %v995 = vpow.pop %v994
    %v996 = vmul.f32 %v993, 1.442695
    %v997 = vpow.pop %v996
    %v998 = vsel %vm155, %v995, 0.0
    %999 = vadd.xlane.f32.xlu0 %v998
    %v1000 = vpop.xlane.xlu0 %999
    %v1001 = vsel %vm155, %v997, 0.0
    %1002 = vadd.xlane.f32.xlu0 %v1001
    %v1003 = vpop.xlane.xlu0 %1002
    %v1004 = vrcp.pop %v1000
    %v1005 = vrcp.pop %v1003
    %v1006 = vmul.f32 %v995, %v1004
    %v1007 = vmul.f32 %v997, %v1005
    %1008 = vrot.lane.b32.xlu0 %v139, 48
    %v1009 = vpop.permute.xlu0 %1008
    %v1012 = vsel %vm155, %v1006, 0
    %1014 = vmatprep.subr.mxu0 0.0
    %1015 = vmatpush1.msra.mxu0 %v1009
    %1016 = vmatprep.subr.mxu0 0.0
    %1017 = vmatpush1.msra.mxu0 0.0
    %1018 = vmatprep.subr.mxu0 0.0
    %1019 = vmatpush1.msra.mxu0 0.0
    %1020 = vmatprep.subr.mxu0 0.0
    %1021 = vmatpush1.msra.mxu0 0.0
    %1022 = vmatprep.subr.mxu0 0.0
    %1023 = vmatpush1.msra.mxu0 0.0
    %1024 = vmatprep.subr.mxu0 0.0
    %1025 = vmatpush1.msra.mxu0 0.0
    %1026 = vmatprep.subr.mxu0 0.0
    %1027 = vmatpush1.msra.mxu0 0.0
    %1028 = vmatprep.subr.mxu0 0.0
    %1029 = vmatpush1.msra.mxu0 0.0
    %1030 = vmatprep.subr.mxu0 0.0
    %1031 = vmatpush1.msra.mxu0 0.0
    %1032 = vmatprep.subr.mxu0 0.0
    %1033 = vmatpush1.msra.mxu0 0.0
    %1034 = vmatprep.subr.mxu0 0.0
    %1035 = vmatpush1.msra.mxu0 0.0
    %1036 = vmatprep.subr.mxu0 0.0
    %1037 = vmatpush1.msra.mxu0 0.0
    %1038 = vmatprep.subr.mxu0 0.0
    %1039 = vmatpush1.msra.mxu0 0.0
    %1040 = vmatprep.subr.mxu0 0.0
    %1041 = vmatpush1.msra.mxu0 0.0
    %1042 = vmatprep.subr.mxu0 0.0
    %1043 = vmatpush1.msra.mxu0 0.0
    %1044 = vmatprep.subr.mxu0 0.0
    %1045 = vmatpush1.msra.mxu0 0.0
    %1046 = vmatprep.subr.mxu0 0.0
    %1047 = vmatpush1.msra.mxu0 0.0
    %1048 = vmatprep.subr.mxu0 0.0
    %1049 = vmatpush1.msra.mxu0 0.0
    %1050 = vmatprep.subr.mxu0 0.0
    %1051 = vmatpush1.msra.mxu0 0.0
    %1052 = vmatprep.subr.mxu0 0.0
    %1053 = vmatpush1.msra.mxu0 0.0
    %1054 = vmatprep.subr.mxu0 0.0
    %1055 = vmatpush1.msra.mxu0 0.0
    %1056 = vmatprep.subr.mxu0 0.0
    %1057 = vmatpush1.msra.mxu0 0.0
    %1058 = vmatprep.subr.mxu0 0.0
    %1059 = vmatpush1.msra.mxu0 0.0
    %1060 = vmatprep.subr.mxu0 0.0
    %1061 = vmatpush1.msra.mxu0 0.0
    %1062 = vmatprep.subr.mxu0 0.0
    %1063 = vmatpush1.msra.mxu0 0.0
    %1064 = vmatprep.subr.mxu0 0.0
    %1065 = vmatpush1.msra.mxu0 0.0
    %1066 = vmatprep.subr.mxu0 0.0
    %1067 = vmatpush1.msra.mxu0 0.0
    %1068 = vmatprep.subr.mxu0 0.0
    %1069 = vmatpush1.msra.mxu0 0.0
    %1070 = vmatprep.subr.mxu0 0.0
    %1071 = vmatpush1.msra.mxu0 0.0
    %1072 = vmatprep.subr.mxu0 0.0
    %1073 = vmatpush1.msra.mxu0 0.0
    %1074 = vmatprep.subr.mxu0 0.0
    %1075 = vmatpush1.msra.mxu0 0.0
    %1076 = vmatprep.subr.mxu0 0.0
    %1077 = vmatpush1.msra.mxu0 0.0
    %1078 = vmatprep.mubr.f32.mxu0 0.0
    %1079 = vmatmul.mubr.f32.gmra.mrb[0].mxu0 %v1012
    %v1080 = vpop.f32.mrb[0].mxu0
    %v1081 = vadd.f32 0.0, %v1080
    %v1082 = vpop.f32.mrb[0].mxu0
    %1083 = vdwg.mxu0
    %1084 = vrot.lane.b32.xlu0 %v144, 48
    %v1085 = vpop.permute.xlu0 %1084
    %v1088 = vsel %vm155, %v1007, 0
    %1090 = vmatprep.subr.mxu0 0.0
    %1091 = vmatpush1.msra.mxu0 %v1085
    %1092 = vmatprep.subr.mxu0 0.0
    %1093 = vmatpush1.msra.mxu0 0.0
    %1094 = vmatprep.subr.mxu0 0.0
    %1095 = vmatpush1.msra.mxu0 0.0
    %1096 = vmatprep.subr.mxu0 0.0
    %1097 = vmatpush1.msra.mxu0 0.0
    %1098 = vmatprep.subr.mxu0 0.0
    %1099 = vmatpush1.msra.mxu0 0.0
    %1100 = vmatprep.subr.mxu0 0.0
    %1101 = vmatpush1.msra.mxu0 0.0
    %1102 = vmatprep.subr.mxu0 0.0
    %1103 = vmatpush1.msra.mxu0 0.0
    %1104 = vmatprep.subr.mxu0 0.0
    %1105 = vmatpush1.msra.mxu0 0.0
    %1106 = vmatprep.subr.mxu0 0.0
    %1107 = vmatpush1.msra.mxu0 0.0
    %1108 = vmatprep.subr.mxu0 0.0
    %1109 = vmatpush1.msra.mxu0 0.0
    %1110 = vmatprep.subr.mxu0 0.0
    %1111 = vmatpush1.msra.mxu0 0.0
    %1112 = vmatprep.subr.mxu0 0.0
    %1113 = vmatpush1.msra.mxu0 0.0
    %1114 = vmatprep.subr.mxu0 0.0
    %1115 = vmatpush1.msra.mxu0 0.0
    %1116 = vmatprep.subr.mxu0 0.0
    %1117 = vmatpush1.msra.mxu0 0.0
    %1118 = vmatprep.subr.mxu0 0.0
    %1119 = vmatpush1.msra.mxu0 0.0
    %1120 = vmatprep.subr.mxu0 0.0
    %1121 = vmatpush1.msra.mxu0 0.0
    %1122 = vmatprep.subr.mxu0 0.0
    %1123 = vmatpush1.msra.mxu0 0.0
    %1124 = vmatprep.subr.mxu0 0.0
    %1125 = vmatpush1.msra.mxu0 0.0
    %1126 = vmatprep.subr.mxu0 0.0
    %1127 = vmatpush1.msra.mxu0 0.0
    %1128 = vmatprep.subr.mxu0 0.0
    %1129 = vmatpush1.msra.mxu0 0.0
    %1130 = vmatprep.subr.mxu0 0.0
    %1131 = vmatpush1.msra.mxu0 0.0
    %1132 = vmatprep.subr.mxu0 0.0
    %1133 = vmatpush1.msra.mxu0 0.0
    %1134 = vmatprep.subr.mxu0 0.0
    %1135 = vmatpush1.msra.mxu0 0.0
    %1136 = vmatprep.subr.mxu0 0.0
    %1137 = vmatpush1.msra.mxu0 0.0
    %1138 = vmatprep.subr.mxu0 0.0
    %1139 = vmatpush1.msra.mxu0 0.0
    %1140 = vmatprep.subr.mxu0 0.0
    %1141 = vmatpush1.msra.mxu0 0.0
    %1142 = vmatprep.subr.mxu0 0.0
    %1143 = vmatpush1.msra.mxu0 0.0
    %1144 = vmatprep.subr.mxu0 0.0
    %1145 = vmatpush1.msra.mxu0 0.0
    %1146 = vmatprep.subr.mxu0 0.0
    %1147 = vmatpush1.msra.mxu0 0.0
    %1148 = vmatprep.subr.mxu0 0.0
    %1149 = vmatpush1.msra.mxu0 0.0
    %1150 = vmatprep.subr.mxu0 0.0
    %1151 = vmatpush1.msra.mxu0 0.0
    %1152 = vmatprep.subr.mxu0 0.0
    %1153 = vmatpush1.msra.mxu0 0.0
    %1154 = vmatprep.mubr.f32.mxu0 0.0
    %1155 = vmatmul.mubr.f32.gmra.mrb[0].mxu0 %v1088
    %v1156 = vpop.f32.mrb[0].mxu0
    %v1157 = vadd.f32 0.0, %v1156
    %v1158 = vpop.f32.mrb[0].mxu0
    %1159 = vdwg.mxu0
    %1162 = vrot.lane.b32.xlu0 %v1081, 16
    %v1163 = vpop.permute.xlu0 %1162
    %1164 = vrot.lane.b32.xlu0 %v1157, 16
    %v1165 = vpop.permute.xlu0 %1164
    %vm1168 = vcmask 195712
    %1169 = vst.msk [vmem:[#allocation2] sm:$0xff] %vm1168, %v1163
    %1170 = vst.msk [vmem:[#allocation2 + $0x8] sm:$0xff] %vm1168, %v1165
    %1171 = vrot.lane.b32.xlu0 %v139, 104
    %v1172 = vpop.permute.xlu0 %1171
    %1173 = vrot.lane.b32.xlu0 %v139, 72
    %v1174 = vpop.permute.xlu0 %1173
    %v1175 = vsel %vm155, %v1172, 0
    %v1177 = vsel %vm155, %v1174, 0
    %1179 = vmatprep.subr.mxu0 0.0
    %1180 = vmatpush1.xpose.msra.mxu0 %v1177
    %1181 = vmatprep.subr.mxu0 0.0
    %1182 = vmatpush1.xpose.msra.mxu0 0.0
    %1183 = vmatprep.subr.mxu0 0.0
    %1184 = vmatpush1.xpose.msra.mxu0 0.0
    %1185 = vmatprep.subr.mxu0 0.0
    %1186 = vmatpush1.xpose.msra.mxu0 0.0
    %1187 = vmatprep.subr.mxu0 0.0
    %1188 = vmatpush1.xpose.msra.mxu0 0.0
    %1189 = vmatprep.subr.mxu0 0.0
    %1190 = vmatpush1.xpose.msra.mxu0 0.0
    %1191 = vmatprep.subr.mxu0 0.0
    %1192 = vmatpush1.xpose.msra.mxu0 0.0
    %1193 = vmatprep.subr.mxu0 0.0
    %1194 = vmatpush1.xpose.msra.mxu0 0.0
    %1195 = vmatprep.subr.mxu0 0.0
    %1196 = vmatpush1.xpose.msra.mxu0 0.0
    %1197 = vmatprep.subr.mxu0 0.0
    %1198 = vmatpush1.xpose.msra.mxu0 0.0
    %1199 = vmatprep.subr.mxu0 0.0
    %1200 = vmatpush1.xpose.msra.mxu0 0.0
    %1201 = vmatprep.subr.mxu0 0.0
    %1202 = vmatpush1.xpose.msra.mxu0 0.0
    %1203 = vmatprep.subr.mxu0 0.0
    %1204 = vmatpush1.xpose.msra.mxu0 0.0
    %1205 = vmatprep.subr.mxu0 0.0
    %1206 = vmatpush1.xpose.msra.mxu0 0.0
    %1207 = vmatprep.subr.mxu0 0.0
    %1208 = vmatpush1.xpose.msra.mxu0 0.0
    %1209 = vmatprep.subr.mxu0 0.0
    %1210 = vmatpush1.xpose.msra.mxu0 0.0
    %1211 = vmatprep.subr.mxu0 0.0
    %1212 = vmatpush1.xpose.msra.mxu0 0.0
    %1213 = vmatprep.subr.mxu0 0.0
    %1214 = vmatpush1.xpose.msra.mxu0 0.0
    %1215 = vmatprep.subr.mxu0 0.0
    %1216 = vmatpush1.xpose.msra.mxu0 0.0
    %1217 = vmatprep.subr.mxu0 0.0
    %1218 = vmatpush1.xpose.msra.mxu0 0.0
    %1219 = vmatprep.subr.mxu0 0.0
    %1220 = vmatpush1.xpose.msra.mxu0 0.0
    %1221 = vmatprep.subr.mxu0 0.0
    %1222 = vmatpush1.xpose.msra.mxu0 0.0
    %1223 = vmatprep.subr.mxu0 0.0
    %1224 = vmatpush1.xpose.msra.mxu0 0.0
    %1225 = vmatprep.subr.mxu0 0.0
    %1226 = vmatpush1.xpose.msra.mxu0 0.0
    %1227 = vmatprep.subr.mxu0 0.0
    %1228 = vmatpush1.xpose.msra.mxu0 0.0
    %1229 = vmatprep.subr.mxu0 0.0
    %1230 = vmatpush1.xpose.msra.mxu0 0.0
    %1231 = vmatprep.subr.mxu0 0.0
    %1232 = vmatpush1.xpose.msra.mxu0 0.0
    %1233 = vmatprep.subr.mxu0 0.0
    %1234 = vmatpush1.xpose.msra.mxu0 0.0
    %1235 = vmatprep.subr.mxu0 0.0
    %1236 = vmatpush1.xpose.msra.mxu0 0.0
    %1237 = vmatprep.subr.mxu0 0.0
    %1238 = vmatpush1.xpose.msra.mxu0 0.0
    %1239 = vmatprep.subr.mxu0 0.0
    %1240 = vmatpush1.xpose.msra.mxu0 0.0
    %1241 = vmatprep.subr.mxu0 0.0
    %1242 = vmatpush1.xpose.msra.mxu0 0.0
    %1243 = vmatprep.mubr.f32.mxu0 0.0
    %1244 = vmatmul.mubr.f32.gmra.mrb[0].mxu0 %v1175
    %v1245 = vpop.f32.mrb[0].mxu0
    %v1246 = vadd.f32 0.0, %v1245
    %v1247 = vpop.f32.mrb[0].mxu0
    %1248 = vdwg.mxu0
    %1249 = vrot.lane.b32.xlu0 %v144, 104
    %v1250 = vpop.permute.xlu0 %1249
    %1251 = vrot.lane.b32.xlu0 %v144, 72
    %v1252 = vpop.permute.xlu0 %1251
    %v1253 = vsel %vm155, %v1250, 0
    %v1255 = vsel %vm155, %v1252, 0
    %1257 = vmatprep.subr.mxu0 0.0
    %1258 = vmatpush1.xpose.msra.mxu0 %v1255
    %1259 = vmatprep.subr.mxu0 0.0
    %1260 = vmatpush1.xpose.msra.mxu0 0.0
    %1261 = vmatprep.subr.mxu0 0.0
    %1262 = vmatpush1.xpose.msra.mxu0 0.0
    %1263 = vmatprep.subr.mxu0 0.0
    %1264 = vmatpush1.xpose.msra.mxu0 0.0
    %1265 = vmatprep.subr.mxu0 0.0
    %1266 = vmatpush1.xpose.msra.mxu0 0.0
    %1267 = vmatprep.subr.mxu0 0.0
    %1268 = vmatpush1.xpose.msra.mxu0 0.0
    %1269 = vmatprep.subr.mxu0 0.0
    %1270 = vmatpush1.xpose.msra.mxu0 0.0
    %1271 = vmatprep.subr.mxu0 0.0
    %1272 = vmatpush1.xpose.msra.mxu0 0.0
    %1273 = vmatprep.subr.mxu0 0.0
    %1274 = vmatpush1.xpose.msra.mxu0 0.0
    %1275 = vmatprep.subr.mxu0 0.0
    %1276 = vmatpush1.xpose.msra.mxu0 0.0
    %1277 = vmatprep.subr.mxu0 0.0
    %1278 = vmatpush1.xpose.msra.mxu0 0.0
    %1279 = vmatprep.subr.mxu0 0.0
    %1280 = vmatpush1.xpose.msra.mxu0 0.0
    %1281 = vmatprep.subr.mxu0 0.0
    %1282 = vmatpush1.xpose.msra.mxu0 0.0
    %1283 = vmatprep.subr.mxu0 0.0
    %1284 = vmatpush1.xpose.msra.mxu0 0.0
    %1285 = vmatprep.subr.mxu0 0.0
    %1286 = vmatpush1.xpose.msra.mxu0 0.0
    %1287 = vmatprep.subr.mxu0 0.0
    %1288 = vmatpush1.xpose.msra.mxu0 0.0
    %1289 = vmatprep.subr.mxu0 0.0
    %1290 = vmatpush1.xpose.msra.mxu0 0.0
    %1291 = vmatprep.subr.mxu0 0.0
    %1292 = vmatpush1.xpose.msra.mxu0 0.0
    %1293 = vmatprep.subr.mxu0 0.0
    %1294 = vmatpush1.xpose.msra.mxu0 0.0
    %1295 = vmatprep.subr.mxu0 0.0
    %1296 = vmatpush1.xpose.msra.mxu0 0.0
    %1297 = vmatprep.subr.mxu0 0.0
    %1298 = vmatpush1.xpose.msra.mxu0 0.0
    %1299 = vmatprep.subr.mxu0 0.0
    %1300 = vmatpush1.xpose.msra.mxu0 0.0
    %1301 = vmatprep.subr.mxu0 0.0
    %1302 = vmatpush1.xpose.msra.mxu0 0.0
    %1303 = vmatprep.subr.mxu0 0.0
    %1304 = vmatpush1.xpose.msra.mxu0 0.0
    %1305 = vmatprep.subr.mxu0 0.0
    %1306 = vmatpush1.xpose.msra.mxu0 0.0
    %1307 = vmatprep.subr.mxu0 0.0
    %1308 = vmatpush1.xpose.msra.mxu0 0.0
    %1309 = vmatprep.subr.mxu0 0.0
    %1310 = vmatpush1.xpose.msra.mxu0 0.0
    %1311 = vmatprep.subr.mxu0 0.0
    %1312 = vmatpush1.xpose.msra.mxu0 0.0
    %1313 = vmatprep.subr.mxu0 0.0
    %1314 = vmatpush1.xpose.msra.mxu0 0.0
    %1315 = vmatprep.subr.mxu0 0.0
    %1316 = vmatpush1.xpose.msra.mxu0 0.0
    %1317 = vmatprep.subr.mxu0 0.0
    %1318 = vmatpush1.xpose.msra.mxu0 0.0
    %1319 = vmatprep.subr.mxu0 0.0
    %1320 = vmatpush1.xpose.msra.mxu0 0.0
    %1321 = vmatprep.mubr.f32.mxu0 0.0
    %1322 = vmatmul.mubr.f32.gmra.mrb[0].mxu0 %v1253
    %v1323 = vpop.f32.mrb[0].mxu0
    %v1324 = vadd.f32 0.0, %v1323
    %v1325 = vpop.f32.mrb[0].mxu0
    %1326 = vdwg.mxu0
    %v1327 = vsel %vm151, %v1246, -inf
    %v1328 = vsel %vm151, %v1324, -inf
    %v1329 = vsel %vm155, %v1327, -inf
    %1330 = vmax.xlane.f32.xlu0 %v1329
    %v1331 = vpop.xlane.xlu0 %1330
    %v1332 = vsel %vm155, %v1328, -inf
    %1333 = vmax.xlane.f32.xlu0 %v1332
    %v1334 = vpop.xlane.xlu0 %1333
    %v1335 = vsub.f32 %v1327, %v1331
    %v1336 = vsub.f32 %v1328, %v1334
    %v1337 = vmul.f32 %v1335, 1.442695
    %v1338 = vpow.pop %v1337
    %v1339 = vmul.f32 %v1336, 1.442695
    %v1340 = vpow.pop %v1339
    %v1341 = vsel %vm155, %v1338, 0.0
    %1342 = vadd.xlane.f32.xlu0 %v1341
    %v1343 = vpop.xlane.xlu0 %1342
    %v1344 = vsel %vm155, %v1340, 0.0
    %1345 = vadd.xlane.f32.xlu0 %v1344
    %v1346 = vpop.xlane.xlu0 %1345
    %v1347 = vrcp.pop %v1343
    %v1348 = vrcp.pop %v1346
    %v1349 = vmul.f32 %v1338, %v1347
    %v1350 = vmul.f32 %v1340, %v1348
    %1351 = vrot.lane.b32.xlu0 %v139, 40
    %v1352 = vpop.permute.xlu0 %1351
    %v1355 = vsel %vm155, %v1349, 0
    %1357 = vmatprep.subr.mxu0 0.0
    %1358 = vmatpush1.msra.mxu0 %v1352
    %1359 = vmatprep.subr.mxu0 0.0
    %1360 = vmatpush1.msra.mxu0 0.0
    %1361 = vmatprep.subr.mxu0 0.0
    %1362 = vmatpush1.msra.mxu0 0.0
    %1363 = vmatprep.subr.mxu0 0.0
    %1364 = vmatpush1.msra.mxu0 0.0
    %1365 = vmatprep.subr.mxu0 0.0
    %1366 = vmatpush1.msra.mxu0 0.0
    %1367 = vmatprep.subr.mxu0 0.0
    %1368 = vmatpush1.msra.mxu0 0.0
    %1369 = vmatprep.subr.mxu0 0.0
    %1370 = vmatpush1.msra.mxu0 0.0
    %1371 = vmatprep.subr.mxu0 0.0
    %1372 = vmatpush1.msra.mxu0 0.0
    %1373 = vmatprep.subr.mxu0 0.0
    %1374 = vmatpush1.msra.mxu0 0.0
    %1375 = vmatprep.subr.mxu0 0.0
    %1376 = vmatpush1.msra.mxu0 0.0
    %1377 = vmatprep.subr.mxu0 0.0
    %1378 = vmatpush1.msra.mxu0 0.0
    %1379 = vmatprep.subr.mxu0 0.0
    %1380 = vmatpush1.msra.mxu0 0.0
    %1381 = vmatprep.subr.mxu0 0.0
    %1382 = vmatpush1.msra.mxu0 0.0
    %1383 = vmatprep.subr.mxu0 0.0
    %1384 = vmatpush1.msra.mxu0 0.0
    %1385 = vmatprep.subr.mxu0 0.0
    %1386 = vmatpush1.msra.mxu0 0.0
    %1387 = vmatprep.subr.mxu0 0.0
    %1388 = vmatpush1.msra.mxu0 0.0
    %1389 = vmatprep.subr.mxu0 0.0
    %1390 = vmatpush1.msra.mxu0 0.0
    %1391 = vmatprep.subr.mxu0 0.0
    %1392 = vmatpush1.msra.mxu0 0.0
    %1393 = vmatprep.subr.mxu0 0.0
    %1394 = vmatpush1.msra.mxu0 0.0
    %1395 = vmatprep.subr.mxu0 0.0
    %1396 = vmatpush1.msra.mxu0 0.0
    %1397 = vmatprep.subr.mxu0 0.0
    %1398 = vmatpush1.msra.mxu0 0.0
    %1399 = vmatprep.subr.mxu0 0.0
    %1400 = vmatpush1.msra.mxu0 0.0
    %1401 = vmatprep.subr.mxu0 0.0
    %1402 = vmatpush1.msra.mxu0 0.0
    %1403 = vmatprep.subr.mxu0 0.0
    %1404 = vmatpush1.msra.mxu0 0.0
    %1405 = vmatprep.subr.mxu0 0.0
    %1406 = vmatpush1.msra.mxu0 0.0
    %1407 = vmatprep.subr.mxu0 0.0
    %1408 = vmatpush1.msra.mxu0 0.0
    %1409 = vmatprep.subr.mxu0 0.0
    %1410 = vmatpush1.msra.mxu0 0.0
    %1411 = vmatprep.subr.mxu0 0.0
    %1412 = vmatpush1.msra.mxu0 0.0
    %1413 = vmatprep.subr.mxu0 0.0
    %1414 = vmatpush1.msra.mxu0 0.0
    %1415 = vmatprep.subr.mxu0 0.0
    %1416 = vmatpush1.msra.mxu0 0.0
    %1417 = vmatprep.subr.mxu0 0.0
    %1418 = vmatpush1.msra.mxu0 0.0
    %1419 = vmatprep.subr.mxu0 0.0
    %1420 = vmatpush1.msra.mxu0 0.0
    %1421 = vmatprep.mubr.f32.mxu0 0.0
    %1422 = vmatmul.mubr.f32.gmra.mrb[0].mxu0 %v1355
    %v1423 = vpop.f32.mrb[0].mxu0
    %v1424 = vadd.f32 0.0, %v1423
    %v1425 = vpop.f32.mrb[0].mxu0
    %1426 = vdwg.mxu0
    %1427 = vrot.lane.b32.xlu0 %v144, 40
    %v1428 = vpop.permute.xlu0 %1427
    %v1431 = vsel %vm155, %v1350, 0
    %1433 = vmatprep.subr.mxu0 0.0
    %1434 = vmatpush1.msra.mxu0 %v1428
    %1435 = vmatprep.subr.mxu0 0.0
    %1436 = vmatpush1.msra.mxu0 0.0
    %1437 = vmatprep.subr.mxu0 0.0
    %1438 = vmatpush1.msra.mxu0 0.0
    %1439 = vmatprep.subr.mxu0 0.0
    %1440 = vmatpush1.msra.mxu0 0.0
    %1441 = vmatprep.subr.mxu0 0.0
    %1442 = vmatpush1.msra.mxu0 0.0
    %1443 = vmatprep.subr.mxu0 0.0
    %1444 = vmatpush1.msra.mxu0 0.0
    %1445 = vmatprep.subr.mxu0 0.0
    %1446 = vmatpush1.msra.mxu0 0.0
    %1447 = vmatprep.subr.mxu0 0.0
    %1448 = vmatpush1.msra.mxu0 0.0
    %1449 = vmatprep.subr.mxu0 0.0
    %1450 = vmatpush1.msra.mxu0 0.0
    %1451 = vmatprep.subr.mxu0 0.0
    %1452 = vmatpush1.msra.mxu0 0.0
    %1453 = vmatprep.subr.mxu0 0.0
    %1454 = vmatpush1.msra.mxu0 0.0
    %1455 = vmatprep.subr.mxu0 0.0
    %1456 = vmatpush1.msra.mxu0 0.0
    %1457 = vmatprep.subr.mxu0 0.0
    %1458 = vmatpush1.msra.mxu0 0.0
    %1459 = vmatprep.subr.mxu0 0.0
    %1460 = vmatpush1.msra.mxu0 0.0
    %1461 = vmatprep.subr.mxu0 0.0
    %1462 = vmatpush1.msra.mxu0 0.0
    %1463 = vmatprep.subr.mxu0 0.0
    %1464 = vmatpush1.msra.mxu0 0.0
    %1465 = vmatprep.subr.mxu0 0.0
    %1466 = vmatpush1.msra.mxu0 0.0
    %1467 = vmatprep.subr.mxu0 0.0
    %1468 = vmatpush1.msra.mxu0 0.0
    %1469 = vmatprep.subr.mxu0 0.0
    %1470 = vmatpush1.msra.mxu0 0.0
    %1471 = vmatprep.subr.mxu0 0.0
    %1472 = vmatpush1.msra.mxu0 0.0
    %1473 = vmatprep.subr.mxu0 0.0
    %1474 = vmatpush1.msra.mxu0 0.0
    %1475 = vmatprep.subr.mxu0 0.0
    %1476 = vmatpush1.msra.mxu0 0.0
    %1477 = vmatprep.subr.mxu0 0.0
    %1478 = vmatpush1.msra.mxu0 0.0
    %1479 = vmatprep.subr.mxu0 0.0
    %1480 = vmatpush1.msra.mxu0 0.0
    %1481 = vmatprep.subr.mxu0 0.0
    %1482 = vmatpush1.msra.mxu0 0.0
    %1483 = vmatprep.subr.mxu0 0.0
    %1484 = vmatpush1.msra.mxu0 0.0
    %1485 = vmatprep.subr.mxu0 0.0
    %1486 = vmatpush1.msra.mxu0 0.0
    %1487 = vmatprep.subr.mxu0 0.0
    %1488 = vmatpush1.msra.mxu0 0.0
    %1489 = vmatprep.subr.mxu0 0.0
    %1490 = vmatpush1.msra.mxu0 0.0
    %1491 = vmatprep.subr.mxu0 0.0
    %1492 = vmatpush1.msra.mxu0 0.0
    %1493 = vmatprep.subr.mxu0 0.0
    %1494 = vmatpush1.msra.mxu0 0.0
    %1495 = vmatprep.subr.mxu0 0.0
    %1496 = vmatpush1.msra.mxu0 0.0
    %1497 = vmatprep.mubr.f32.mxu0 0.0
    %1498 = vmatmul.mubr.f32.gmra.mrb[0].mxu0 %v1431
    %v1499 = vpop.f32.mrb[0].mxu0
    %v1500 = vadd.f32 0.0, %v1499
    %v1501 = vpop.f32.mrb[0].mxu0
    %1502 = vdwg.mxu0
    %1505 = vrot.lane.b32.xlu0 %v1424, 24
    %v1506 = vpop.permute.xlu0 %1505
    %1507 = vrot.lane.b32.xlu0 %v1500, 24
    %v1508 = vpop.permute.xlu0 %1507
    %vm1511 = vcmask 261312
    %1512 = vst.msk [vmem:[#allocation2] sm:$0xff] %vm1511, %v1506
    %1513 = vst.msk [vmem:[#allocation2 + $0x8] sm:$0xff] %vm1511, %v1508
    %v1514 = vld [vmem:[#allocation2] sm:$0xff]
    %v1515 = vld [vmem:[#allocation2 + $0x8] sm:$0xff]
    %v1516 = vld [vmem:[#allocation8] sm:$0xff]
    %v1517 = vld [vmem:[#allocation8 + $0x8] sm:$0xff]
    %v1518 = vld [vmem:[#allocation8 + $0x10] sm:$0xff]
    %v1519 = vld [vmem:[#allocation8 + $0x18] sm:$0xff]
    %v1520 = vld [vmem:[%s3] sm:$0x1]
    %v1522 = vlaneseq
    %v1523 = vshrl.u32 %v1522, 7
    %v1524 = vsub.s32 0, %v1523
    %v1525 = vrot.slane %v1520, %v1524
    %v1528 = vsel %vm65, %v1514, 0
    %v1531 = vsel %vm65, %v1515, 0
    %1533 = vmatprep.subr.mxu0 0.0
    %1534 = vmatpush1.msra.mxu0 %v1516
    %1535 = vmatprep.subr.mxu0 0.0
    %1536 = vmatpush1.msra.mxu0 %v1517
    %1537 = vmatprep.subr.mxu0 0.0
    %1538 = vmatpush1.msra.mxu0 %v1518
    %1539 = vmatprep.subr.mxu0 0.0
    %1540 = vmatpush1.msra.mxu0 %v1519
    %1541 = vmatprep.subr.mxu0 0.0
    %1542 = vmatpush1.msra.mxu0 0.0
    %1543 = vmatprep.subr.mxu0 0.0
    %1544 = vmatpush1.msra.mxu0 0.0
    %1545 = vmatprep.subr.mxu0 0.0
    %1546 = vmatpush1.msra.mxu0 0.0
    %1547 = vmatprep.subr.mxu0 0.0
    %1548 = vmatpush1.msra.mxu0 0.0
    %1549 = vmatprep.subr.mxu0 0.0
    %1550 = vmatpush1.msra.mxu0 0.0
    %1551 = vmatprep.subr.mxu0 0.0
    %1552 = vmatpush1.msra.mxu0 0.0
    %1553 = vmatprep.subr.mxu0 0.0
    %1554 = vmatpush1.msra.mxu0 0.0
    %1555 = vmatprep.subr.mxu0 0.0
    %1556 = vmatpush1.msra.mxu0 0.0
    %1557 = vmatprep.subr.mxu0 0.0
    %1558 = vmatpush1.msra.mxu0 0.0
    %1559 = vmatprep.subr.mxu0 0.0
    %1560 = vmatpush1.msra.mxu0 0.0
    %1561 = vmatprep.subr.mxu0 0.0
    %1562 = vmatpush1.msra.mxu0 0.0
    %1563 = vmatprep.subr.mxu0 0.0
    %1564 = vmatpush1.msra.mxu0 0.0
    %1565 = vmatprep.subr.mxu0 0.0
    %1566 = vmatpush1.msra.mxu0 0.0
    %1567 = vmatprep.subr.mxu0 0.0
    %1568 = vmatpush1.msra.mxu0 0.0
    %1569 = vmatprep.subr.mxu0 0.0
    %1570 = vmatpush1.msra.mxu0 0.0
    %1571 = vmatprep.subr.mxu0 0.0
    %1572 = vmatpush1.msra.mxu0 0.0
    %1573 = vmatprep.subr.mxu0 0.0
    %1574 = vmatpush1.msra.mxu0 0.0
    %1575 = vmatprep.subr.mxu0 0.0
    %1576 = vmatpush1.msra.mxu0 0.0
    %1577 = vmatprep.subr.mxu0 0.0
    %1578 = vmatpush1.msra.mxu0 0.0
    %1579 = vmatprep.subr.mxu0 0.0
    %1580 = vmatpush1.msra.mxu0 0.0
    %1581 = vmatprep.subr.mxu0 0.0
    %1582 = vmatpush1.msra.mxu0 0.0
    %1583 = vmatprep.subr.mxu0 0.0
    %1584 = vmatpush1.msra.mxu0 0.0
    %1585 = vmatprep.subr.mxu0 0.0
    %1586 = vmatpush1.msra.mxu0 0.0
    %1587 = vmatprep.subr.mxu0 0.0
    %1588 = vmatpush1.msra.mxu0 0.0
    %1589 = vmatprep.subr.mxu0 0.0
    %1590 = vmatpush1.msra.mxu0 0.0
    %1591 = vmatprep.subr.mxu0 0.0
    %1592 = vmatpush1.msra.mxu0 0.0
    %1593 = vmatprep.subr.mxu0 0.0
    %1594 = vmatpush1.msra.mxu0 0.0
    %1595 = vmatprep.subr.mxu0 0.0
    %1596 = vmatpush1.msra.mxu0 0.0
    %1597 = vmatprep.mubr.f32.mxu0 0.0
    %1598 = vmatmul.mubr.f32.gmra.mrb[0].mxu0 %v1528
    %v1599 = vpop.f32.mrb[0].mxu0
    %v1600 = vadd.f32 %v1525, %v1599
    %v1601 = vpop.f32.mrb[0].mxu0
    %1602 = vmatprep.mubr.f32.mxu0 0.0
    %1603 = vmatmul.mubr.f32.gmra.mrb[0].mxu0 %v1531
    %v1604 = vpop.f32.mrb[0].mxu0
    %v1605 = vadd.f32 %v1525, %v1604
    %v1606 = vpop.f32.mrb[0].mxu0
    %1607 = vdwg.mxu0
    %1608 = vst.msk [vmem:[#allocation9] sm:$0xff] %vm65, %v1600
    %1609 = vst.msk [vmem:[#allocation9 + $0x8] sm:$0xff] %vm65, %v1605
    // Predicated region
    $region30: #{tpu_custom_call.1} parent=1 // pred_check
      _
    $region31: #{tpu_custom_call.1} parent=1 // pred_check_branch
      %1611 = sbr.rel (0) target = $region33
    $region32: #{tpu_custom_call.1} parent=1 // pred_region
      %s1613 = ssub.s32 256, 256
      %1614 = vsyncadd [#allocation5], %s1613
      %s1615 = sshll.u32 [#allocation9], 4
      %s1616 = int_to_ptr.vmem [resolvable:$true] %s1615
      %1621 = dma.vmem_to_hbm [thread:$0]  %s1616, 256, %s4, [#allocation5], 128, 128, 8
    $region33: #{tpu_custom_call.1} parent=1 // pred_fallthru
      _
    // Predicated region
    $region34: #{tpu_custom_call.1} parent=1 // pred_check
      _
    $region35: #{tpu_custom_call.1} parent=1 // pred_check_branch
      %1623 = sbr.rel (0) target = $region37
    $region36: #{tpu_custom_call.1} parent=1 // pred_region
      %1624 = dma.done [#allocation5], 256
    $region37: #{tpu_custom_call.1} parent=1 // pred_fallthru
      _
    %1625 = vsyncpa [#allocation4], 1
    %1626 = vsyncpa [#allocation7], 1
    %1627 = vsyncpa [#allocation5], 1

</llo_original>
